<compile_context>
chip_gen: v7x
topology: tpu7x:2x2x1
jax: 0.10.0
libtpu: 0.0.40
codegen_flags: <defaults>
</compile_context>

<pallas_src>
import functools

import jax
import jax.numpy as jnp
import numpy as np
from jax.experimental import pallas as pl
from jax.experimental.pallas import tpu as pltpu

BN_EPS = 1e-5


# ---------------------------------------------------------------------------
# Kernel: fused (prev-layer BN+ReLU) -> reflect-pad conv -> BN partial stats
# ---------------------------------------------------------------------------
def conv_stats_kernel(x_ref, m_ref, scale_ref, shift_ref, out_ref, stats_ref,
                      *, NB, H, W, cin, cout, prenorm, mxu_dtype):
    """One grid step = NB batch elements (lane-merged NHWC layout).

    x_ref     : [NB, H, W*cin]        activation slab (f32 or bf16)
    m_ref     : [3*W*cin, W*cout]     K-fused folded conv matrix (all 9 taps +
                                      reflect column padding baked in), mxu dtype
    scale_ref : [1, W*cin]            folded BN scale of the previous layer
    shift_ref : [1, W*cin]            folded BN shift of the previous layer
    out_ref   : [NB, H, W*cout]       raw (pre-BN) conv output, lane-dense
    stats_ref : [1, 2, W*cout]        lane-dense partial (sum, sum-of-squares)
    """
    x = x_ref[...].astype(jnp.float32)                       # [NB, H, W*cin]
    if prenorm:
        # Fused BatchNorm (previous layer) + ReLU on the VPU, lane-dense.
        x = jnp.maximum(x * scale_ref[0] + shift_ref[0], 0.0)

    # Reflect row padding realised as three row-shifted views that are
    # concatenated along lanes -> single K = 3*W*cin contraction.
    # (At large H the dy=1/2 shifts would be better done with pltpu.roll on the
    #  XLU; negligible at H=16.)
    top = jnp.concatenate([x[:, 1:2, :], x[:, :H - 1, :]], axis=1)   # row h-1
    bot = jnp.concatenate([x[:, 1:, :], x[:, H - 2:H - 1, :]], axis=1)  # row h+1
    lhs = jnp.concatenate([top, x, bot], axis=2).reshape(NB * H, 3 * W * cin)

    # One MXU matmul (bf16 inputs, f32 accumulator).  The 9 conv taps and the
    # reflect column padding are folded into m_ref, so there are no per-tap
    # slices and the MXU (not the VPU) does all the accumulation.
    acc = jnp.dot(lhs.astype(mxu_dtype), m_ref[...],
                  preferred_element_type=jnp.float32)        # [NB*H, W*cout]
    # NOTE: Conv2d bias intentionally omitted -- a per-channel constant is
    # exactly cancelled by the BatchNorm mean subtraction that follows.

    # Lane-dense per-tile BN partials; the tiny fold over W and the cross-tile
    # reduction happen in the wrapper, so the grid axis stays fully parallel.
    stats_ref[0] = jnp.stack(
        [jnp.sum(acc, axis=0), jnp.sum(acc * acc, axis=0)])  # [2, W*cout]

    out_ref[...] = acc.reshape(NB, H, W * cout).astype(out_ref.dtype)


# ---------------------------------------------------------------------------
# Trace-time weight folding (plain JAX/numpy, no data dependence)
# ---------------------------------------------------------------------------
def _fold_conv_weights(w9, W):
    """[9, Cin, Cout] tap weights (tap = dy*3+dx, PyTorch cross-correlation)
    -> [3*W*Cin, W*Cout] K-fused banded matrix acting on lane-merged rows,
    with the reflect column padding folded in."""
    _, cin, cout = w9.shape

    def _reflect(i):
        if i < 0:
            return -i
        if i >= W:
            return 2 * W - 2 - i
        return i

    sel = np.zeros((3, W, W), np.float32)                    # [dx, w_out, w_src]
    for dx in range(3):
        for w in range(W):
            sel[dx, w, _reflect(w + dx - 1)] += 1.0
    w_taps = w9.reshape(3, 3, cin, cout)                     # [dy, dx, cin, cout]
    m = jnp.einsum("xws,yxcd->yscwd", jnp.asarray(sel), w_taps)
    return m.reshape(3 * W * cin, W * cout)


def _pick_batch_block(N, H, W, cin, cout, min_grid=2):
    """Largest divisor of N that (a) still leaves >= min(N, min_grid) grid
    steps for megacore sharding and (b) keeps the double-buffered activation
    blocks within ~8 MiB of VMEM."""
    cap = max(1, N // min(N, min_grid))
    bytes_per_img = 4 * H * W * (cin + cout)
    cap = min(cap, max(1, (4 << 20) // max(bytes_per_img, 1)))
    nb = 1
    for d in range(1, cap + 1):
        if N % d == 0:
            nb = d
    return nb


def _vmem_limit_bytes(nb, H, W, cin, cout):
    """Tile-derived scoped-VMEM budget.  Only grid-varying blocks (activation
    in/out) are counted double-buffered; grid-invariant operands once."""
    act = 2 * nb * H * W * cin + 2 * nb * H * W * cout       # double-buffered
    const = 3 * W * cin * W * cout + 2 * W * cin + 2 * 2 * W * cout
    work = 2 * nb * H * (3 * W * cin + W * cout)             # lhs + acc temps
    est = 4 * (act + const + work)                           # f32-conservative
    try:
        phys = int(pltpu.get_tpu_info().vmem_capacity_bytes)
    except Exception:                                        # pragma: no cover
        phys = 64 << 20                                      # v7x worst case
    lo = min(32 << 20, phys // 2)    # never below the platform default scoped
    hi = (3 * phys) // 4             # leave headroom for Mosaic scratch
    return int(min(max(2 * est, lo), hi))


# ---------------------------------------------------------------------------
# pallas_call wrapper
# ---------------------------------------------------------------------------
def _conv_stats_call(x_mrg, m_cat, scale_t, shift_t, *, H, W, cin, cout,
                     prenorm, out_dtype, mxu_dtype):
    N = x_mrg.shape[0]
    nb = _pick_batch_block(N, H, W, cin, cout)
    n_steps = N // nb
    kernel = functools.partial(conv_stats_kernel, NB=nb, H=H, W=W, cin=cin,
                               cout=cout, prenorm=prenorm, mxu_dtype=mxu_dtype)
    return pl.pallas_call(
        kernel,
        grid=(n_steps,),
        in_specs=[
            pl.BlockSpec((nb, H, W * cin), lambda n: (n, 0, 0)),
            pl.BlockSpec((3 * W * cin, W * cout), lambda n: (0, 0)),
            pl.BlockSpec((1, W * cin), lambda n: (0, 0)),
            pl.BlockSpec((1, W * cin), lambda n: (0, 0)),
        ],
        out_specs=(
            pl.BlockSpec((nb, H, W * cout), lambda n: (n, 0, 0)),
            pl.BlockSpec((1, 2, W * cout), lambda n: (n, 0, 0)),
        ),
        out_shape=(
            jax.ShapeDtypeStruct((N, H, W * cout), out_dtype),
            jax.ShapeDtypeStruct((n_steps, 2, W * cout), jnp.float32),
        ),
        compiler_params=pltpu.CompilerParams(
            dimension_semantics=("parallel",),
            vmem_limit_bytes=_vmem_limit_bytes(nb, H, W, cin, cout),
        ),
    )(x_mrg, m_cat, scale_t, shift_t)


# ---------------------------------------------------------------------------
# ConvBlock forward
# ---------------------------------------------------------------------------
def conv_block_forward(x_nchw, params, *, mxu_dtype=jnp.bfloat16):
    """ConvBlock.forward for a 4-D NCHW input.

    params: list of (w [9, Cin, Cout], gamma [Cout], beta [Cout]).
    Only the forward activation is produced.
    # TODO(synk): BatchNorm running_mean/running_var updates and the 5-D
    # smart_forward / pad_value masking path are host-side bookkeeping
    # (pure reshape + masking outside the conv) and are not implemented here.
    """
    N, C, H, W = x_nchw.shape
    if H < 2 or W < 2:
        raise ValueError("reflect padding requires H >= 2 and W >= 2")
    n_px = N * H * W
    use_bf16 = jnp.dtype(mxu_dtype) == jnp.dtype(jnp.bfloat16)
    inter_dtype = jnp.bfloat16 if use_bf16 else jnp.float32

    # NCHW -> lane-merged NHWC slab [N, H, W*C] (layout glue in XLA).
    cur = jnp.transpose(x_nchw.astype(jnp.float32),
                        (0, 2, 3, 1)).reshape(N, H, W * C)

    cin = C
    scale_t = jnp.zeros((1, W * cin), jnp.float32)   # unused by the first layer
    shift_t = jnp.zeros((1, W * cin), jnp.float32)
    n_layers = len(params)

    for li, (w9, gamma, beta) in enumerate(params):
        cout = w9.shape[-1]
        last = li == n_layers - 1
        m_cat = _fold_conv_weights(w9, W).astype(mxu_dtype)   # [3*W*cin, W*cout]
        raw, stats = _conv_stats_call(
            cur, m_cat, scale_t, shift_t, H=H, W=W, cin=cin, cout=cout,
            prenorm=(li > 0),
            out_dtype=jnp.float32 if last else inter_dtype,
            mxu_dtype=mxu_dtype)

        # Cross-tile + over-W BN reduction (tiny) and fold into scale/shift.
        # NOTE: single-pass E[x^2]-mean^2 in f32; fine at the checked tolerance.
        tot = stats.reshape(-1, 2, W, cout).sum(axis=(0, 2))  # [2, cout]
        mean = tot[0] / n_px
        var = tot[1] / n_px - mean * mean                     # biased (training)
        scale = gamma * jax.lax.rsqrt(var + BN_EPS)
        shift = beta - mean * scale
        scale_t = jnp.tile(scale, W)[None, :]                 # [1, W*cout]
        shift_t = jnp.tile(shift, W)[None, :]
        cur, cin = raw, cout

    # Final BatchNorm + ReLU as plain jnp: XLA fuses it with the output
    # transpose, so no extra tiny elementwise kernel launch.
    out = jnp.maximum(cur * scale_t + shift_t, 0.0)
    return jnp.transpose(out.reshape(N, H, W, cin), (0, 3, 1, 2))   # -> NCHW


# ---------------------------------------------------------------------------
# Parameters + pure-JAX reference
# ---------------------------------------------------------------------------
def init_params(nkernels, key):
    """Deterministic synthetic parameters (shapes match the PyTorch module).

    Conv2d weight [Cout, Cin, 3, 3] is stored tap-major as [9, Cin, Cout].
    The Conv2d bias is dropped (mathematically cancelled by the BatchNorm);
    gamma/beta are randomised to exercise the affine path.
    """
    params = []
    for i in range(len(nkernels) - 1):
        cin, cout = nkernels[i], nkernels[i + 1]
        key, kw, kg, kb = jax.random.split(key, 4)
        w_pt = jax.random.normal(kw, (cout, cin, 3, 3), jnp.float32) * 0.1
        w = jnp.transpose(w_pt, (2, 3, 1, 0)).reshape(9, cin, cout)
        gamma = 1.0 + 0.1 * jax.random.normal(kg, (cout,), jnp.float32)
        beta = 0.05 * jax.random.normal(kb, (cout,), jnp.float32)
        params.append((w, gamma, beta))
    return params


def ref_forward(x_nchw, params):
    """Pure-JAX reference: Conv2d(reflect pad) + training-mode BN + ReLU."""
    x = x_nchw.astype(jnp.float32)
    for (w9, gamma, beta) in params:
        cin, cout = w9.shape[1], w9.shape[2]
        w = jnp.transpose(w9.reshape(3, 3, cin, cout), (3, 2, 0, 1))   # OIHW
        xp = jnp.pad(x, ((0, 0), (0, 0), (1, 1), (1, 1)), mode="reflect")
        y = jax.lax.conv_general_dilated(
            xp, w, window_strides=(1, 1), padding="VALID",
            dimension_numbers=("NCHW", "OIHW", "NCHW"),
            precision=jax.lax.Precision.HIGHEST)
        mean = jnp.mean(y, axis=(0, 2, 3), keepdims=True)
        var = jnp.mean((y - mean) ** 2, axis=(0, 2, 3), keepdims=True)
        y = (y - mean) * jax.lax.rsqrt(var + BN_EPS)
        y = y * gamma[None, :, None, None] + beta[None, :, None, None]
        x = jnp.maximum(y, 0.0)
    return x


if __name__ == "__main__":
    # ConvBlock(nkernels=[4, 8, 8], norm='batch', last_relu=True,
    #           padding_mode='reflect'), 4-D NCHW input.
    # N=4 so the kernel exercises both batch stacking (NB=2 per grid step)
    # and a >=2-step parallel grid for megacore sharding.
    nkernels = [4, 8, 8]
    key = jax.random.PRNGKey(0)
    key, kx = jax.random.split(key)
    x = jax.random.normal(kx, (4, 4, 16, 16), jnp.float32)   # [N, C, H, W]

    params = init_params(nkernels, key)

    fwd_bf16 = jax.jit(functools.partial(conv_block_forward,
                                         mxu_dtype=jnp.bfloat16))
    fwd_f32 = jax.jit(functools.partial(conv_block_forward,
                                        mxu_dtype=jnp.float32))

    out = jax.block_until_ready(fwd_bf16(x, params))
    assert out.shape == (4, nkernels[-1], 16, 16), out.shape
    assert bool(jnp.all(jnp.isfinite(out)))
    assert bool(jnp.all(out >= 0.0))          # last_relu=True

    # Correctness checks against a pure-JAX reference:
    #   * f32 MXU path must match tightly,
    #   * bf16 MXU / bf16-intermediate path within bf16 rounding tolerance.
    ref = ref_forward(x, params)
    out_f32 = jax.block_until_ready(fwd_f32(x, params))
    err_f32 = float(jnp.max(jnp.abs(out_f32 - ref)))
    assert err_f32 < 2e-2, f"f32 path max abs err vs reference: {err_f32}"
    err_bf16 = float(jnp.max(jnp.abs(out - ref)))
    assert err_bf16 < 1e-1, f"bf16 path max abs err vs reference: {err_bf16}"

    print("KERNEL_OK")
</pallas_src>

<mosaic_0001>
module attributes {stable_mosaic.version = 11 : i64} {
  func.func @conv_stats_kernel(%arg0: i32, %arg1: memref<2x16x64xf32, #tpu.memory_space<vmem>>, %arg2: memref<192x128xbf16, #tpu.memory_space<vmem>>, %arg3: memref<1x64xf32, #tpu.memory_space<vmem>>, %arg4: memref<1x64xf32, #tpu.memory_space<vmem>>, %arg5: memref<2x16x128xbf16, #tpu.memory_space<vmem>>, %arg6: memref<1x2x128xf32, #tpu.memory_space<vmem>>) attributes {dimension_semantics = [#tpu.dimension_semantics<parallel>], iteration_bounds = array<i64: 2>, scalar_prefetch = 0 : i64, scratch_operands = 0 : i64, tpu.core_type = #tpu.core_type<tc>, window_params = [{transform_indices = @transform_0, window_bounds = array<i64: 2, 16, 64>}, {pipeline_mode = #tpu.pipeline_mode<synchronous>, transform_indices = @transform_1, window_bounds = array<i64: 192, 128>}, {pipeline_mode = #tpu.pipeline_mode<synchronous>, transform_indices = @transform_2, window_bounds = array<i64: 1, 64>}, {pipeline_mode = #tpu.pipeline_mode<synchronous>, transform_indices = @transform_3, window_bounds = array<i64: 1, 64>}, {transform_indices = @transform_4, window_bounds = array<i64: 2, 16, 128>}, {transform_indices = @transform_5, window_bounds = array<i64: 1, 2, 128>}]} {
    %c0 = arith.constant 0 : index
    %c0_0 = arith.constant 0 : index
    %c0_1 = arith.constant 0 : index
    %0 = vector.load %arg1[%c0, %c0_0, %c0_1] : memref<2x16x64xf32, #tpu.memory_space<vmem>>, vector<2x16x64xf32>
    %1 = vector.extract_strided_slice %0 {offsets = [0, 1, 0], sizes = [2, 1, 64], strides = [1, 1, 1]} : vector<2x16x64xf32> to vector<2x1x64xf32>
    %2 = vector.extract_strided_slice %0 {offsets = [0, 0, 0], sizes = [2, 15, 64], strides = [1, 1, 1]} : vector<2x16x64xf32> to vector<2x15x64xf32>
    %3 = tpu.concatenate %1, %2 in 1 : vector<2x1x64xf32>, vector<2x15x64xf32> -> vector<2x16x64xf32>
    %4 = vector.extract_strided_slice %0 {offsets = [0, 1, 0], sizes = [2, 15, 64], strides = [1, 1, 1]} : vector<2x16x64xf32> to vector<2x15x64xf32>
    %5 = vector.extract_strided_slice %0 {offsets = [0, 14, 0], sizes = [2, 1, 64], strides = [1, 1, 1]} : vector<2x16x64xf32> to vector<2x1x64xf32>
    %6 = tpu.concatenate %4, %5 in 1 : vector<2x15x64xf32>, vector<2x1x64xf32> -> vector<2x16x64xf32>
    %7 = tpu.concatenate %3, %0, %6 in 2 : vector<2x16x64xf32>, vector<2x16x64xf32>, vector<2x16x64xf32> -> vector<2x16x192xf32>
    %8 = vector.shape_cast %7 : vector<2x16x192xf32> to vector<32x192xf32>
    %9 = arith.truncf %8 : vector<32x192xf32> to vector<32x192xbf16>
    %c0_2 = arith.constant 0 : index
    %c0_3 = arith.constant 0 : index
    %10 = vector.load %arg2[%c0_2, %c0_3] : memref<192x128xbf16, #tpu.memory_space<vmem>>, vector<192x128xbf16>
    %cst = arith.constant dense<0.000000e+00> : vector<32x128xf32>
    %11 = tpu.matmul %9, %10, %cst {dimension_numbers = #tpu.dot_dimension_numbers<[1], [0], [0], [1], [0, 0, 1, 1], [], []>} : vector<32x192xbf16>, vector<192x128xbf16>, vector<32x128xf32> -> vector<32x128xf32>
    %cst_4 = arith.constant dense<0.000000e+00> : vector<128xf32>
    %12 = vector.multi_reduction <add>, %11, %cst_4 [0] : vector<32x128xf32> to vector<128xf32>
    %13 = arith.mulf %11, %11 : vector<32x128xf32>
    %cst_5 = arith.constant dense<0.000000e+00> : vector<128xf32>
    %14 = vector.multi_reduction <add>, %13, %cst_5 [0] : vector<32x128xf32> to vector<128xf32>
    %15 = vector.shape_cast %12 : vector<128xf32> to vector<1x128xf32>
    %16 = vector.shape_cast %14 : vector<128xf32> to vector<1x128xf32>
    %17 = tpu.concatenate %15, %16 in 0 : vector<1x128xf32>, vector<1x128xf32> -> vector<2x128xf32>
    %c0_6 = arith.constant 0 : index
    %c0_7 = arith.constant 0 : index
    %c0_8 = arith.constant 0 : index
    %18 = vector.load %arg6[%c0_6, %c0_7, %c0_8] : memref<1x2x128xf32, #tpu.memory_space<vmem>>, vector<1x2x128xf32>
    %19 = vector.shape_cast %18 : vector<1x2x128xf32> to vector<2x128xf32>
    %20 = vector.shape_cast %17 : vector<2x128xf32> to vector<1x2x128xf32>
    tpu.vector_store %arg6[%c0_6, %c0_7, %c0_8], %20 {strides = array<i32>} : memref<1x2x128xf32, #tpu.memory_space<vmem>>, vector<1x2x128xf32>,
    %21 = vector.shape_cast %11 : vector<32x128xf32> to vector<2x16x128xf32>
    %22 = arith.truncf %21 : vector<2x16x128xf32> to vector<2x16x128xbf16>
    %c0_9 = arith.constant 0 : index
    %c0_10 = arith.constant 0 : index
    %c0_11 = arith.constant 0 : index
    %23 = vector.load %arg5[%c0_9, %c0_10, %c0_11] : memref<2x16x128xbf16, #tpu.memory_space<vmem>>, vector<2x16x128xbf16>
    tpu.vector_store %arg5[%c0_9, %c0_10, %c0_11], %22 {strides = array<i32>} : memref<2x16x128xbf16, #tpu.memory_space<vmem>>, vector<2x16x128xbf16>,
    return
  }
  func.func @transform_0(%arg0: i32) -> (i32, i32, i32) {
    %c0_i32 = arith.constant 0 : i32
    %c0_i32_0 = arith.constant 0 : i32
    %c0_i32_1 = arith.constant 0 : i32
    return %arg0, %c0_i32, %c0_i32_0 : i32, i32, i32
  }
  func.func @transform_1(%arg0: i32) -> (i32, i32) {
    %c0_i32 = arith.constant 0 : i32
    %c0_i32_0 = arith.constant 0 : i32
    %c0_i32_1 = arith.constant 0 : i32
    return %c0_i32, %c0_i32_0 : i32, i32
  }
  func.func @transform_2(%arg0: i32) -> (i32, i32) {
    %c0_i32 = arith.constant 0 : i32
    %c0_i32_0 = arith.constant 0 : i32
    %c0_i32_1 = arith.constant 0 : i32
    return %c0_i32, %c0_i32_0 : i32, i32
  }
  func.func @transform_3(%arg0: i32) -> (i32, i32) {
    %c0_i32 = arith.constant 0 : i32
    %c0_i32_0 = arith.constant 0 : i32
    %c0_i32_1 = arith.constant 0 : i32
    return %c0_i32, %c0_i32_0 : i32, i32
  }
  func.func @transform_4(%arg0: i32) -> (i32, i32, i32) {
    %c0_i32 = arith.constant 0 : i32
    %c0_i32_0 = arith.constant 0 : i32
    %c0_i32_1 = arith.constant 0 : i32
    return %arg0, %c0_i32, %c0_i32_0 : i32, i32, i32
  }
  func.func @transform_5(%arg0: i32) -> (i32, i32, i32) {
    %c0_i32 = arith.constant 0 : i32
    %c0_i32_0 = arith.constant 0 : i32
    %c0_i32_1 = arith.constant 0 : i32
    return %arg0, %c0_i32, %c0_i32_0 : i32, i32, i32
  }
}

module attributes {stable_mosaic.version = 11 : i64} {
  func.func @conv_stats_kernel(%arg0: i32, %arg1: memref<2x16x128xbf16, #tpu.memory_space<vmem>>, %arg2: memref<384x128xbf16, #tpu.memory_space<vmem>>, %arg3: memref<1x128xf32, #tpu.memory_space<vmem>>, %arg4: memref<1x128xf32, #tpu.memory_space<vmem>>, %arg5: memref<2x16x128xf32, #tpu.memory_space<vmem>>, %arg6: memref<1x2x128xf32, #tpu.memory_space<vmem>>) attributes {dimension_semantics = [#tpu.dimension_semantics<parallel>], iteration_bounds = array<i64: 2>, scalar_prefetch = 0 : i64, scratch_operands = 0 : i64, tpu.core_type = #tpu.core_type<tc>, window_params = [{transform_indices = @transform_0, window_bounds = array<i64: 2, 16, 128>}, {pipeline_mode = #tpu.pipeline_mode<synchronous>, transform_indices = @transform_1, window_bounds = array<i64: 384, 128>}, {pipeline_mode = #tpu.pipeline_mode<synchronous>, transform_indices = @transform_2, window_bounds = array<i64: 1, 128>}, {pipeline_mode = #tpu.pipeline_mode<synchronous>, transform_indices = @transform_3, window_bounds = array<i64: 1, 128>}, {transform_indices = @transform_4, window_bounds = array<i64: 2, 16, 128>}, {transform_indices = @transform_5, window_bounds = array<i64: 1, 2, 128>}]} {
    %c0 = arith.constant 0 : index
    %c0_0 = arith.constant 0 : index
    %c0_1 = arith.constant 0 : index
    %0 = vector.load %arg1[%c0, %c0_0, %c0_1] : memref<2x16x128xbf16, #tpu.memory_space<vmem>>, vector<2x16x128xbf16>
    %1 = arith.extf %0 : vector<2x16x128xbf16> to vector<2x16x128xf32>
    %c0_2 = arith.constant 0 : index
    %c0_3 = arith.constant 0 : index
    %2 = vector.load %arg3[%c0_2, %c0_3] : memref<1x128xf32, #tpu.memory_space<vmem>>, vector<1x128xf32>
    %3 = vector.shape_cast %2 : vector<1x128xf32> to vector<128xf32>
    %4 = vector.shape_cast %3 : vector<128xf32> to vector<1x1x128xf32>
    %5 = vector.broadcast %4 : vector<1x1x128xf32> to vector<2x16x128xf32>
    %6 = arith.mulf %1, %5 : vector<2x16x128xf32>
    %c0_4 = arith.constant 0 : index
    %c0_5 = arith.constant 0 : index
    %7 = vector.load %arg4[%c0_4, %c0_5] : memref<1x128xf32, #tpu.memory_space<vmem>>, vector<1x128xf32>
    %8 = vector.shape_cast %7 : vector<1x128xf32> to vector<128xf32>
    %9 = vector.shape_cast %8 : vector<128xf32> to vector<1x1x128xf32>
    %10 = vector.broadcast %9 : vector<1x1x128xf32> to vector<2x16x128xf32>
    %11 = arith.addf %6, %10 : vector<2x16x128xf32>
    %cst = arith.constant 0.000000e+00 : f32
    %12 = vector.broadcast %cst : f32 to vector<2x16x128xf32>
    %13 = arith.maximumf %11, %12 : vector<2x16x128xf32>
    %14 = vector.extract_strided_slice %13 {offsets = [0, 1, 0], sizes = [2, 1, 128], strides = [1, 1, 1]} : vector<2x16x128xf32> to vector<2x1x128xf32>
    %15 = vector.extract_strided_slice %13 {offsets = [0, 0, 0], sizes = [2, 15, 128], strides = [1, 1, 1]} : vector<2x16x128xf32> to vector<2x15x128xf32>
    %16 = tpu.concatenate %14, %15 in 1 : vector<2x1x128xf32>, vector<2x15x128xf32> -> vector<2x16x128xf32>
    %17 = vector.extract_strided_slice %13 {offsets = [0, 1, 0], sizes = [2, 15, 128], strides = [1, 1, 1]} : vector<2x16x128xf32> to vector<2x15x128xf32>
    %18 = vector.extract_strided_slice %13 {offsets = [0, 14, 0], sizes = [2, 1, 128], strides = [1, 1, 1]} : vector<2x16x128xf32> to vector<2x1x128xf32>
    %19 = tpu.concatenate %17, %18 in 1 : vector<2x15x128xf32>, vector<2x1x128xf32> -> vector<2x16x128xf32>
    %20 = tpu.concatenate %16, %13, %19 in 2 : vector<2x16x128xf32>, vector<2x16x128xf32>, vector<2x16x128xf32> -> vector<2x16x384xf32>
    %21 = vector.shape_cast %20 : vector<2x16x384xf32> to vector<32x384xf32>
    %22 = arith.truncf %21 : vector<32x384xf32> to vector<32x384xbf16>
    %c0_6 = arith.constant 0 : index
    %c0_7 = arith.constant 0 : index
    %23 = vector.load %arg2[%c0_6, %c0_7] : memref<384x128xbf16, #tpu.memory_space<vmem>>, vector<384x128xbf16>
    %cst_8 = arith.constant dense<0.000000e+00> : vector<32x128xf32>
    %24 = tpu.matmul %22, %23, %cst_8 {dimension_numbers = #tpu.dot_dimension_numbers<[1], [0], [0], [1], [0, 0, 1, 1], [], []>} : vector<32x384xbf16>, vector<384x128xbf16>, vector<32x128xf32> -> vector<32x128xf32>
    %cst_9 = arith.constant dense<0.000000e+00> : vector<128xf32>
    %25 = vector.multi_reduction <add>, %24, %cst_9 [0] : vector<32x128xf32> to vector<128xf32>
    %26 = arith.mulf %24, %24 : vector<32x128xf32>
    %cst_10 = arith.constant dense<0.000000e+00> : vector<128xf32>
    %27 = vector.multi_reduction <add>, %26, %cst_10 [0] : vector<32x128xf32> to vector<128xf32>
    %28 = vector.shape_cast %25 : vector<128xf32> to vector<1x128xf32>
    %29 = vector.shape_cast %27 : vector<128xf32> to vector<1x128xf32>
    %30 = tpu.concatenate %28, %29 in 0 : vector<1x128xf32>, vector<1x128xf32> -> vector<2x128xf32>
    %c0_11 = arith.constant 0 : index
    %c0_12 = arith.constant 0 : index
    %c0_13 = arith.constant 0 : index
    %31 = vector.load %arg6[%c0_11, %c0_12, %c0_13] : memref<1x2x128xf32, #tpu.memory_space<vmem>>, vector<1x2x128xf32>
    %32 = vector.shape_cast %31 : vector<1x2x128xf32> to vector<2x128xf32>
    %33 = vector.shape_cast %30 : vector<2x128xf32> to vector<1x2x128xf32>
    tpu.vector_store %arg6[%c0_11, %c0_12, %c0_13], %33 {strides = array<i32>} : memref<1x2x128xf32, #tpu.memory_space<vmem>>, vector<1x2x128xf32>,
    %34 = vector.shape_cast %24 : vector<32x128xf32> to vector<2x16x128xf32>
    %c0_14 = arith.constant 0 : index
    %c0_15 = arith.constant 0 : index
    %c0_16 = arith.constant 0 : index
    %35 = vector.load %arg5[%c0_14, %c0_15, %c0_16] : memref<2x16x128xf32, #tpu.memory_space<vmem>>, vector<2x16x128xf32>
    tpu.vector_store %arg5[%c0_14, %c0_15, %c0_16], %34 {strides = array<i32>} : memref<2x16x128xf32, #tpu.memory_space<vmem>>, vector<2x16x128xf32>,
    return
  }
  func.func @transform_0(%arg0: i32) -> (i32, i32, i32) {
    %c0_i32 = arith.constant 0 : i32
    %c0_i32_0 = arith.constant 0 : i32
    %c0_i32_1 = arith.constant 0 : i32
    return %arg0, %c0_i32, %c0_i32_0 : i32, i32, i32
  }
  func.func @transform_1(%arg0: i32) -> (i32, i32) {
    %c0_i32 = arith.constant 0 : i32
    %c0_i32_0 = arith.constant 0 : i32
    %c0_i32_1 = arith.constant 0 : i32
    return %c0_i32, %c0_i32_0 : i32, i32
  }
  func.func @transform_2(%arg0: i32) -> (i32, i32) {
    %c0_i32 = arith.constant 0 : i32
    %c0_i32_0 = arith.constant 0 : i32
    %c0_i32_1 = arith.constant 0 : i32
    return %c0_i32, %c0_i32_0 : i32, i32
  }
  func.func @transform_3(%arg0: i32) -> (i32, i32) {
    %c0_i32 = arith.constant 0 : i32
    %c0_i32_0 = arith.constant 0 : i32
    %c0_i32_1 = arith.constant 0 : i32
    return %c0_i32, %c0_i32_0 : i32, i32
  }
  func.func @transform_4(%arg0: i32) -> (i32, i32, i32) {
    %c0_i32 = arith.constant 0 : i32
    %c0_i32_0 = arith.constant 0 : i32
    %c0_i32_1 = arith.constant 0 : i32
    return %arg0, %c0_i32, %c0_i32_0 : i32, i32, i32
  }
  func.func @transform_5(%arg0: i32) -> (i32, i32, i32) {
    %c0_i32 = arith.constant 0 : i32
    %c0_i32_0 = arith.constant 0 : i32
    %c0_i32_1 = arith.constant 0 : i32
    return %arg0, %c0_i32, %c0_i32_0 : i32, i32, i32
  }
}

</mosaic_0001>

<llo_original>
// kernel: tile.28
$region0: #{tile.28}
  #allocation0 [shape = 's32[1]{0}', space=sflag, size = 0x4, scoped, tag = 'scoped memory for tile.28']
  %s0 = inlined_call_operand.vmem [shape: f32[8], index: 0, kind: input, shape index: {}]
  %s1 = inlined_call_operand.vmem [shape: f32[16,8], index: 1, kind: output, shape index: {}]
  // Predicated region
  $region2: #{tile.28} parent=0 // pred_check
    _
  $region3: #{tile.28} parent=0 // pred_check_branch
    %3 = sbr.rel (0) target = $region5
  $region4: #{tile.28} parent=0 // pred_region
    _
  $region5: #{tile.28} parent=0 // pred_fallthru
    _
  %v4 = vld [vmem:[%s0] ss:$0 sm:$0xff]
  %5 = vst [vmem:[%s1] sm:$0xff] %v4
  %s6 = scalar_lea.vmem %s1, 8
  %7 = vst [vmem:[%s6] sm:$0xff] %v4

// kernel: tile.29
$region0: #{tile.29}
  %s0 = inlined_call_operand.vmem [shape: f32[16,8], index: 0, kind: input, shape index: {}]
  %s1 = inlined_call_operand.vmem [shape: f32[1,128], index: 1, kind: output, shape index: {}]
  $region1: #{tile.29} parent=0
    #allocation0 [shape = 'u8[4096]{0}', space=vmem, size = 0x1000, scoped, tag = 'scoped mem for output reshape']
    %v2 = vld [vmem:[%s0] sm:$0x1]
    %vm3 = vcmask 64512
    %4 = vst.msk [vmem:[#allocation0] sm:$0x1] %vm3, %v2
    %s5 = scalar_lea.vmem %s0, 15
    %v6 = vld [vmem:[%s5] sm:$0x1]
    %7 = vrot.lane.b32.xlu0 %v6, 120
    %v8 = vpop.permute.xlu0 %7
    %vm9 = vcmask 1048512
    %10 = vst.msk [vmem:[#allocation0] sm:$0x1] %vm9, %v8
    %s11 = scalar_lea.vmem %s0, 14
    %v12 = vld [vmem:[%s11] sm:$0x1]
    %13 = vrot.lane.b32.xlu0 %v12, 112
    %v14 = vpop.permute.xlu0 %13
    %vm15 = vcmask 982912
    %16 = vst.msk [vmem:[#allocation0] sm:$0x1] %vm15, %v14
    %s17 = scalar_lea.vmem %s0, 13
    %v18 = vld [vmem:[%s17] sm:$0x1]
    %19 = vrot.lane.b32.xlu0 %v18, 104
    %v20 = vpop.permute.xlu0 %19
    %vm21 = vcmask 917312
    %22 = vst.msk [vmem:[#allocation0] sm:$0x1] %vm21, %v20
    %s23 = scalar_lea.vmem %s0, 12
    %v24 = vld [vmem:[%s23] sm:$0x1]
    %25 = vrot.lane.b32.xlu0 %v24, 96
    %v26 = vpop.permute.xlu0 %25
    %vm27 = vcmask 851712
    %28 = vst.msk [vmem:[#allocation0] sm:$0x1] %vm27, %v26
    %s29 = scalar_lea.vmem %s0, 11
    %v30 = vld [vmem:[%s29] sm:$0x1]
    %31 = vrot.lane.b32.xlu0 %v30, 88
    %v32 = vpop.permute.xlu0 %31
    %vm33 = vcmask 786112
    %34 = vst.msk [vmem:[#allocation0] sm:$0x1] %vm33, %v32
    %s35 = scalar_lea.vmem %s0, 10
    %v36 = vld [vmem:[%s35] sm:$0x1]
    %37 = vrot.lane.b32.xlu0 %v36, 80
    %v38 = vpop.permute.xlu0 %37
    %vm39 = vcmask 720512
    %40 = vst.msk [vmem:[#allocation0] sm:$0x1] %vm39, %v38
    %s41 = scalar_lea.vmem %s0, 9
    %v42 = vld [vmem:[%s41] sm:$0x1]
    %43 = vrot.lane.b32.xlu0 %v42, 72
    %v44 = vpop.permute.xlu0 %43
    %vm45 = vcmask 654912
    %46 = vst.msk [vmem:[#allocation0] sm:$0x1] %vm45, %v44
    %s47 = scalar_lea.vmem %s0, 8
    %v48 = vld [vmem:[%s47] sm:$0x1]
    %49 = vrot.lane.b32.xlu0 %v48, 64
    %v50 = vpop.permute.xlu0 %49
    %vm51 = vcmask 589312
    %52 = vst.msk [vmem:[#allocation0] sm:$0x1] %vm51, %v50
    %s53 = scalar_lea.vmem %s0, 7
    %v54 = vld [vmem:[%s53] sm:$0x1]
    %55 = vrot.lane.b32.xlu0 %v54, 56
    %v56 = vpop.permute.xlu0 %55
    %vm57 = vcmask 523712
    %58 = vst.msk [vmem:[#allocation0] sm:$0x1] %vm57, %v56
    %s59 = scalar_lea.vmem %s0, 6
    %v60 = vld [vmem:[%s59] sm:$0x1]
    %61 = vrot.lane.b32.xlu0 %v60, 48
    %v62 = vpop.permute.xlu0 %61
    %vm63 = vcmask 458112
    %64 = vst.msk [vmem:[#allocation0] sm:$0x1] %vm63, %v62
    %s65 = scalar_lea.vmem %s0, 5
    %v66 = vld [vmem:[%s65] sm:$0x1]
    %67 = vrot.lane.b32.xlu0 %v66, 40
    %v68 = vpop.permute.xlu0 %67
    %vm69 = vcmask 392512
    %70 = vst.msk [vmem:[#allocation0] sm:$0x1] %vm69, %v68
    %s71 = scalar_lea.vmem %s0, 4
    %v72 = vld [vmem:[%s71] sm:$0x1]
    %73 = vrot.lane.b32.xlu0 %v72, 32
    %v74 = vpop.permute.xlu0 %73
    %vm75 = vcmask 326912
    %76 = vst.msk [vmem:[#allocation0] sm:$0x1] %vm75, %v74
    %s77 = scalar_lea.vmem %s0, 3
    %v78 = vld [vmem:[%s77] sm:$0x1]
    %79 = vrot.lane.b32.xlu0 %v78, 24
    %v80 = vpop.permute.xlu0 %79
    %vm81 = vcmask 261312
    %82 = vst.msk [vmem:[#allocation0] sm:$0x1] %vm81, %v80
    %s83 = scalar_lea.vmem %s0, 2
    %v84 = vld [vmem:[%s83] sm:$0x1]
    %85 = vrot.lane.b32.xlu0 %v84, 16
    %v86 = vpop.permute.xlu0 %85
    %vm87 = vcmask 195712
    %88 = vst.msk [vmem:[#allocation0] sm:$0x1] %vm87, %v86
    %s89 = scalar_lea.vmem %s0, 1
    %v90 = vld [vmem:[%s89] sm:$0x1]
    %91 = vrot.lane.b32.xlu0 %v90, 8
    %v92 = vpop.permute.xlu0 %91
    %vm93 = vcmask 130112
    %94 = vst.msk [vmem:[#allocation0] sm:$0x1] %vm93, %v92
    %s96 = sshllo.u32 0, 1
    %v98 = vld [vmem:[#allocation0] sm:%s96]
    %s99 = sshllo.u32 0, 1
    %100 = vst [vmem:[%s1] sm:%s99] %v98

// kernel: conv_block_forward.2
$region0: #{conv_block_forward.2}
  #allocation0 [shape = 'u32[]', space=smem, size = 0x4, offset = 0x4, fixed_abs, tag = 'smem constant byte address 0x4 - core index']
  #allocation1 [shape = 'u32[144,128]{1,0:T(1,128)}', space=vmem, size = 0x12000, scoped, tag = 'internal scratch']
  %s0 = inlined_call_operand.vmem [shape: f32[4,16,64], index: 0, kind: input, shape index: {}]
  %s1 = inlined_call_operand.vmem [shape: bf16[192,128], index: 1, kind: input, shape index: {}]
  %s2 = inlined_call_operand.vmem [shape: f32[1,64], index: 2, kind: input, shape index: {}, may-alias: {2,3}]
  %s3 = inlined_call_operand.vmem [shape: f32[1,64], index: 3, kind: input, shape index: {}, may-alias: {2,3}]
  %s4 = inlined_call_operand.vmem [shape: bf16[4,16,128], index: 4, kind: output, shape index: {0}]
  %s5 = inlined_call_operand.vmem [shape: f32[2,2,128], index: 5, kind: output, shape index: {1}]
  %6 = xla_tuple %s4, %s5
  %s7 = sld [smem:[#allocation0]]
  $region57: #{conv_block_forward.2} parent=0
    _
  %s9 = ssub.s32 1, %s7
  %s10 = scalar_select 0, %s9, %s7
  loop: start=0, step=1, limit=4
  $region2: #{conv_block_forward.2} parent=0 // loop_pre_header
    _
  $region3: #{conv_block_forward.2} parent=0 // loop_header
    %s12 = sphi 0, %s16
    %p13 = scmp.ge.s32.totalorder %s12, 4
    %s22 = sphi 0, %s24
    %s25 = sphi 0, %s22
    %s26 = sphi 0, %s25
    %s42 = sphi 0, %s26
    %s46 = sphi 0, %s46
    %s48 = sphi 0, %s46
    %s49 = sphi 0, %s48
    %s63 = sphi 0, %s49
    %s67 = sphi 0, %s67
    %s69 = sphi 0, %s67
    %s70 = sphi 0, %s69
    %s84 = sphi 0, %s70
    %s88 = sphi 0, %s88
    %s90 = sphi 0, %s88
    %s91 = sphi 0, %s90
    %s105 = sphi 0, %s91
    %s111 = sphi 0, %s113
    %s114 = sphi 0, %s111
    %s115 = sphi 0, %s114
    %s131 = sphi 0, %s115
    %s137 = sphi 0, %s139
    %s140 = sphi 0, %s137
    %s141 = sphi 0, %s140
    %s157 = sphi 0, %s141
  $region4: #{conv_block_forward.2} parent=0 // loop_header_branch
    %15 = sbr.rel (%p13) target = $region8
  $region5: #{conv_block_forward.2} parent=0 // loop_body
    %s17 = ssub.s32 %s12, 1
    %s18 = ssub.s32 %s12, 2
    %s19 = sadd.s32 %s12, 1
    %s20 = ssub.s32 %s12, %s19
    %p21 = scmp.eq.s32.totalorder %s20, 0
    %s23 = sadd.s32 %s22, 1
    %s24 = scalar_select %p21, %s22, %s23
    %p27 = pneg %p21
    %p28 = scmp.eq.s32.totalorder %s12, 1
    %p29 = por %p27, %p28
    %p30 = scmp.ne.s32.totalorder %s22, %s25
    %p31 = scmp.eq.s32.totalorder %s12, 0
    %p32 = por %p30, %p31
    %p33 = scmp.ne.s32.totalorder %s22, %s25
    %p34 = scmp.eq.s32.totalorder %s17, 1
    %p35 = por %p33, %p34
    %p36 = scmp.ne.s32.totalorder %s25, %s26
    %p37 = scmp.eq.s32.totalorder %s17, 0
    %p38 = por %p36, %p37
    %p39 = scmp.ne.s32.totalorder %s25, %s26
    %p40 = scmp.eq.s32.totalorder %s18, 1
    %p41 = por %p39, %p40
    %p43 = scmp.ne.s32.totalorder %s26, %s42
    %p44 = scmp.eq.s32.totalorder %s18, 0
    %p45 = por %p43, %p44
    %s47 = sadd.s32 %s46, 1
    %p50 = scmp.eq.s32.totalorder %s12, 1
    %p51 = scmp.ne.s32.totalorder %s46, %s48
    %p52 = scmp.eq.s32.totalorder %s12, 0
    %p53 = por %p51, %p52
    %p54 = scmp.ne.s32.totalorder %s46, %s48
    %p55 = scmp.eq.s32.totalorder %s17, 1
    %p56 = por %p54, %p55
    %p57 = scmp.ne.s32.totalorder %s48, %s49
    %p58 = scmp.eq.s32.totalorder %s17, 0
    %p59 = por %p57, %p58
    %p60 = scmp.ne.s32.totalorder %s48, %s49
    %p61 = scmp.eq.s32.totalorder %s18, 1
    %p62 = por %p60, %p61
    %p64 = scmp.ne.s32.totalorder %s49, %s63
    %p65 = scmp.eq.s32.totalorder %s18, 0
    %p66 = por %p64, %p65
    %s68 = sadd.s32 %s67, 1
    %p71 = scmp.eq.s32.totalorder %s12, 1
    %p72 = scmp.ne.s32.totalorder %s67, %s69
    %p73 = scmp.eq.s32.totalorder %s12, 0
    %p74 = por %p72, %p73
    %p75 = scmp.ne.s32.totalorder %s67, %s69
    %p76 = scmp.eq.s32.totalorder %s17, 1
    %p77 = por %p75, %p76
    %p78 = scmp.ne.s32.totalorder %s69, %s70
    %p79 = scmp.eq.s32.totalorder %s17, 0
    %p80 = por %p78, %p79
    %p81 = scmp.ne.s32.totalorder %s69, %s70
    %p82 = scmp.eq.s32.totalorder %s18, 1
    %p83 = por %p81, %p82
    %p85 = scmp.ne.s32.totalorder %s70, %s84
    %p86 = scmp.eq.s32.totalorder %s18, 0
    %p87 = por %p85, %p86
    %s89 = sadd.s32 %s88, 1
    %p92 = scmp.eq.s32.totalorder %s12, 1
    %p93 = scmp.ne.s32.totalorder %s88, %s90
    %p94 = scmp.eq.s32.totalorder %s12, 0
    %p95 = por %p93, %p94
    %p96 = scmp.ne.s32.totalorder %s88, %s90
    %p97 = scmp.eq.s32.totalorder %s17, 1
    %p98 = por %p96, %p97
    %p99 = scmp.ne.s32.totalorder %s90, %s91
    %p100 = scmp.eq.s32.totalorder %s17, 0
    %p101 = por %p99, %p100
    %p102 = scmp.ne.s32.totalorder %s90, %s91
    %p103 = scmp.eq.s32.totalorder %s18, 1
    %p104 = por %p102, %p103
    %p106 = scmp.ne.s32.totalorder %s91, %s105
    %p107 = scmp.eq.s32.totalorder %s18, 0
    %p108 = por %p106, %p107
    %s109 = ssub.s32 %s12, %s19
    %p110 = scmp.eq.s32.totalorder %s109, 0
    %s112 = sadd.s32 %s111, 1
    %s113 = scalar_select %p110, %s111, %s112
    %p116 = pneg %p110
    %p117 = scmp.eq.s32.totalorder %s12, 1
    %p118 = por %p116, %p117
    %p119 = scmp.ne.s32.totalorder %s111, %s114
    %p120 = scmp.eq.s32.totalorder %s12, 0
    %p121 = por %p119, %p120
    %p122 = scmp.ne.s32.totalorder %s111, %s114
    %p123 = scmp.eq.s32.totalorder %s17, 1
    %p124 = por %p122, %p123
    %p125 = scmp.ne.s32.totalorder %s114, %s115
    %p126 = scmp.eq.s32.totalorder %s17, 0
    %p127 = por %p125, %p126
    %p128 = scmp.ne.s32.totalorder %s114, %s115
    %p129 = scmp.eq.s32.totalorder %s18, 1
    %p130 = por %p128, %p129
    %p132 = scmp.ne.s32.totalorder %s115, %s131
    %p133 = scmp.eq.s32.totalorder %s18, 0
    %p134 = por %p132, %p133
    %s135 = ssub.s32 %s12, %s19
    %p136 = scmp.eq.s32.totalorder %s135, 0
    %s138 = sadd.s32 %s137, 1
    %s139 = scalar_select %p136, %s137, %s138
    %p142 = pneg %p136
    %p143 = scmp.eq.s32.totalorder %s12, 1
    %p144 = por %p142, %p143
    %p145 = scmp.ne.s32.totalorder %s137, %s140
    %p146 = scmp.eq.s32.totalorder %s12, 0
    %p147 = por %p145, %p146
    %p148 = scmp.ne.s32.totalorder %s137, %s140
    %p149 = scmp.eq.s32.totalorder %s17, 1
    %p150 = por %p148, %p149
    %p151 = scmp.ne.s32.totalorder %s140, %s141
    %p152 = scmp.eq.s32.totalorder %s17, 0
    %p153 = por %p151, %p152
    %p154 = scmp.ne.s32.totalorder %s140, %s141
    %p155 = scmp.eq.s32.totalorder %s18, 1
    %p156 = por %p154, %p155
    %p158 = scmp.ne.s32.totalorder %s141, %s157
    %p159 = scmp.eq.s32.totalorder %s18, 0
    %p160 = por %p158, %p159
    %p161 = scmp.le.s32.totalorder 1, %s12
    %p162 = scmp.lt.s32.totalorder %s12, 3
    %p163 = pnand %p161, %p162
    %p164 = pneg %p163
    // Predicated region
    $region9: #{conv_block_forward.2} parent=5 // pred_check
      _
    $region10: #{conv_block_forward.2} parent=5 // pred_check_branch
      %166 = sbr.rel (%p163) target = $region12
    $region11: #{conv_block_forward.2} parent=5 // pred_region
      %s167 = ssub.s32 %s12, 1
      // Predicated region
      $region13: #{conv_block_forward.2} parent=11 // pred_check
        %p168 = pneg %p59
      $region14: #{conv_block_forward.2} parent=11 // pred_check_branch
        %170 = sbr.rel (%p168) target = $region16
      $region15: #{conv_block_forward.2} parent=11 // pred_region
        _
      $region16: #{conv_block_forward.2} parent=11 // pred_fallthru
        _
      // Predicated region
      $region17: #{conv_block_forward.2} parent=11 // pred_check
        %p171 = pneg %p80
      $region18: #{conv_block_forward.2} parent=11 // pred_check_branch
        %173 = sbr.rel (%p171) target = $region20
      $region19: #{conv_block_forward.2} parent=11 // pred_region
        _
      $region20: #{conv_block_forward.2} parent=11 // pred_fallthru
        _
      // Predicated region
      $region21: #{conv_block_forward.2} parent=11 // pred_check
        %p174 = pneg %p101
      $region22: #{conv_block_forward.2} parent=11 // pred_check_branch
        %176 = sbr.rel (%p174) target = $region24
      $region23: #{conv_block_forward.2} parent=11 // pred_region
        _
      $region24: #{conv_block_forward.2} parent=11 // pred_fallthru
        _
    $region12: #{conv_block_forward.2} parent=5 // pred_fallthru
      _
    %p177 = scmp.lt.s32.totalorder %s12, 2
    // Predicated region
    $region25: #{conv_block_forward.2} parent=5 // pred_check
      %p178 = pneg %p177
    $region26: #{conv_block_forward.2} parent=5 // pred_check_branch
      %180 = sbr.rel (%p178) target = $region28
    $region27: #{conv_block_forward.2} parent=5 // pred_region
      // Predicated region
      $region29: #{conv_block_forward.2} parent=27 // pred_check
        %p181 = pneg %p32
      $region30: #{conv_block_forward.2} parent=27 // pred_check_branch
        %183 = sbr.rel (%p181) target = $region32
      $region31: #{conv_block_forward.2} parent=27 // pred_region
        %s184 = smul.u32 2, %s12
        %p185 = scmp.lt.s32.totalorder %s184, 3
        %s186 = scalar_select %p185, %s184, 3
        %s187 = smul.addr %s186, 2
        %s188 = smul.addr %s187, 8
        %s189 = scalar_lea.vmem %s0, %s188
        %s190 = smul.u32 2, %s12
      $region32: #{conv_block_forward.2} parent=27 // pred_fallthru
        _
    $region28: #{conv_block_forward.2} parent=5 // pred_fallthru
      _
    %p191 = scmp.le.s32.totalorder 1, %s12
    %p192 = scmp.lt.s32.totalorder %s12, 3
    %p193 = pnand %p191, %p192
    %p194 = pneg %p193
    // Predicated region
    $region33: #{conv_block_forward.2} parent=5 // pred_check
      _
    $region34: #{conv_block_forward.2} parent=5 // pred_check_branch
      %196 = sbr.rel (%p193) target = $region36
    $region35: #{conv_block_forward.2} parent=5 // pred_region
      %s197 = ssub.s32 %s12, 1
      %s198 = smul.u32 2, %s17
      %p199 = scmp.lt.s32.totalorder %s198, 3
      %s200 = scalar_select %p199, %s198, 3
      %s201 = smul.addr %s200, 2
      %s202 = smul.addr %s201, 8
      %s203 = scalar_lea.vmem %s0, %s202
      %p204 = pneg %p38
      %p205 = pneg %p35
      %p206 = pneg %p59
      %p207 = pneg %p56
      %p208 = pneg %p80
      %p209 = pneg %p77
      %p210 = pneg %p101
      %p211 = pneg %p98
      %p212 = pneg %p127
      %p213 = pneg %p124
      %s214 = smul.u32 2, %s17
      %p215 = scmp.lt.s32.totalorder %s214, 3
      %s216 = scalar_select %p215, %s214, 3
      %s217 = smul.addr %s216, 2
      %s218 = smul.addr %s217, 4
      %s219 = scalar_lea.vmem %s4, %s218
      %p220 = pneg %p153
      %p221 = pneg %p150
      %p222 = scmp.lt.s32.totalorder %s17, 1
      %s223 = scalar_select %p222, %s17, 1
      %s224 = smul.addr %s223, 2
      %s225 = scalar_lea.vmem %s5, %s224
      %s226 = smul.u32 2, %s17
      %p227 = scmp.lt.s32.totalorder %s226, 3
      %s228 = scalar_select %p227, %s226, 3
      %s229 = smul.addr %s228, 2
      %s230 = smul.addr %s229, 8
      %s231 = scalar_lea.vmem %s0, %s230
      %s232 = smul.u32 2, %s17
      %s233 = smul.u32 2, %s17
      %p234 = scmp.lt.s32.totalorder %s233, 3
      %s235 = scalar_select %p234, %s233, 3
      %s236 = smul.addr %s235, 2
      %s237 = smul.addr %s236, 4
      %s238 = scalar_lea.vmem %s4, %s237
      %s239 = smul.u32 2, %s17
      %p240 = scmp.lt.s32.totalorder %s17, 1
      %s241 = scalar_select %p240, %s17, 1
      %s242 = smul.addr %s241, 2
      %s243 = scalar_lea.vmem %s5, %s242
      %v245 = vld [vmem:[%s231] sm:$0xff]
      %v246 = vld [vmem:[%s231 + $0x8] sm:$0xff]
      %v247 = vld [vmem:[%s231 + $0x10] sm:$0xff]
      %v248 = vld [vmem:[%s231 + $0x18] sm:$0xff]
      %v251 = vrot.slane %v245, 1
      %v252 = vrot.slane %v247, 1
      %vm257 = vcmask 1040384
      %v258 = vrot.slane %v245, 7
      %v259 = vrot.slane %v246, 7
      %v260 = vsel %vm257, %v258, %v259
      %v261 = vrot.slane %v247, 7
      %v262 = vrot.slane %v248, 7
      %v263 = vsel %vm257, %v261, %v262
      %v268 = vsel %vm257, %v251, %v258
      %v269 = vsel %vm257, %v252, %v261
      %vm270 = vcmask 1046528
      %v271 = vrot.slane %v246, 1
      %v272 = vsel %vm270, %v251, %v271
      %v273 = vrot.slane %v248, 1
      %v274 = vsel %vm270, %v252, %v273
      %v281 = vsel %vm270, %v271, %v259
      %v282 = vsel %vm270, %v273, %v262
      %283 = vrot.lane.b32.xlu0 %v245, 64
      %v284 = vpop.permute.xlu0 %283
      %285 = vrot.lane.b32.xlu0 %v246, 64
      %v286 = vpop.permute.xlu0 %285
      %287 = vrot.lane.b32.xlu0 %v247, 64
      %v288 = vpop.permute.xlu0 %287
      %289 = vrot.lane.b32.xlu0 %v248, 64
      %v290 = vpop.permute.xlu0 %289
      %vm295 = vcmask 523264
      %v296 = vsel %vm295, %v268, %v284
      %v297 = vsel %vm295, %v260, %v286
      %v298 = vsel %vm295, %v269, %v288
      %v299 = vsel %vm295, %v263, %v290
      %v300 = vpack.c.bf16 %v297, %v296
      %v301 = vpack.c.bf16 %v281, %v272
      %v302 = vpack.c.bf16 %v299, %v298
      %v303 = vpack.c.bf16 %v282, %v274
      %v304 = vld [vmem:[%s1] sm:$0xf]
      %v305 = vld [vmem:[%s1 + $0x4] sm:$0xf]
      %v306 = vld [vmem:[%s1 + $0x8] sm:$0xf]
      %v307 = vld [vmem:[%s1 + $0xc] sm:$0xf]
      %v308 = vld [vmem:[%s1 + $0x10] sm:$0xf]
      %v309 = vld [vmem:[%s1 + $0x14] sm:$0xf]
      %v310 = vld [vmem:[%s1 + $0x18] sm:$0xf]
      %v311 = vld [vmem:[%s1 + $0x1c] sm:$0xf]
      %v312 = vld [vmem:[%s1 + $0x20] sm:$0xf]
      %v313 = vld [vmem:[%s1 + $0x24] sm:$0xf]
      %v314 = vld [vmem:[%s1 + $0x28] sm:$0xf]
      %v315 = vld [vmem:[%s1 + $0x2c] sm:$0xf]
      %v316 = vld [vmem:[%s1 + $0x30] sm:$0xf]
      %v317 = vld [vmem:[%s1 + $0x34] sm:$0xf]
      %v318 = vld [vmem:[%s1 + $0x38] sm:$0xf]
      %v319 = vld [vmem:[%s1 + $0x3c] sm:$0xf]
      %v320 = vld [vmem:[%s1 + $0x40] sm:$0xf]
      %v321 = vld [vmem:[%s1 + $0x44] sm:$0xf]
      %v322 = vld [vmem:[%s1 + $0x48] sm:$0xf]
      %v323 = vld [vmem:[%s1 + $0x4c] sm:$0xf]
      %v324 = vld [vmem:[%s1 + $0x50] sm:$0xf]
      %v325 = vld [vmem:[%s1 + $0x54] sm:$0xf]
      %v326 = vld [vmem:[%s1 + $0x58] sm:$0xf]
      %v327 = vld [vmem:[%s1 + $0x5c] sm:$0xf]
      %v352 = vunpack.c.l.b16 %v304
      %v353 = vunpack.c.l.b16 %v305
      %v354 = vunpack.c.l.b16 %v306
      %v355 = vunpack.c.l.b16 %v307
      %v356 = vunpack.c.l.b16 %v308
      %v357 = vunpack.c.l.b16 %v309
      %v358 = vunpack.c.l.b16 %v310
      %v359 = vunpack.c.l.b16 %v311
      %v360 = vunpack.c.l.b16 %v312
      %v361 = vunpack.c.l.b16 %v313
      %v362 = vunpack.c.l.b16 %v314
      %v363 = vunpack.c.l.b16 %v315
      %v364 = vunpack.c.l.b16 %v316
      %v365 = vunpack.c.l.b16 %v317
      %v366 = vunpack.c.l.b16 %v318
      %v367 = vunpack.c.l.b16 %v319
      %v368 = vunpack.c.l.b16 %v320
      %v369 = vunpack.c.l.b16 %v321
      %v370 = vunpack.c.l.b16 %v322
      %v371 = vunpack.c.l.b16 %v323
      %v372 = vunpack.c.l.b16 %v324
      %v373 = vunpack.c.l.b16 %v325
      %v374 = vunpack.c.l.b16 %v326
      %v375 = vunpack.c.l.b16 %v327
      %v376 = vpack.c.b16 %v353, %v352
      %v377 = vpack.c.b16 %v355, %v354
      %v378 = vpack.c.b16 %v357, %v356
      %v379 = vpack.c.b16 %v359, %v358
      %v380 = vpack.c.b16 %v361, %v360
      %v381 = vpack.c.b16 %v363, %v362
      %v382 = vpack.c.b16 %v365, %v364
      %v383 = vpack.c.b16 %v367, %v366
      %v384 = vpack.c.b16 %v369, %v368
      %v385 = vpack.c.b16 %v371, %v370
      %v386 = vpack.c.b16 %v373, %v372
      %v387 = vpack.c.b16 %v375, %v374
      %v401 = vsel %vm295, %v301, 0
      %v404 = vsel %vm295, %v303, 0
      %406 = vmatprep.subr.bf16.mxu0 0
      %407 = vmatpush1.bf16.msra.mxu0 %v376
      %408 = vmatprep.subr.bf16.mxu0 0
      %409 = vmatpush1.bf16.msra.mxu0 %v377
      %410 = vmatprep.subr.bf16.mxu0 0
      %411 = vmatpush1.bf16.msra.mxu0 %v378
      %412 = vmatprep.subr.bf16.mxu0 0
      %413 = vmatpush1.bf16.msra.mxu0 %v379
      %414 = vmatprep.subr.bf16.mxu0 0
      %415 = vmatpush1.bf16.msra.mxu0 %v380
      %416 = vmatprep.subr.bf16.mxu0 0
      %417 = vmatpush1.bf16.msra.mxu0 %v381
      %418 = vmatprep.subr.bf16.mxu0 0
      %419 = vmatpush1.bf16.msra.mxu0 %v382
      %420 = vmatprep.subr.bf16.mxu0 0
      %421 = vmatpush1.bf16.msra.mxu0 %v383
      %422 = vmatprep.subr.bf16.mxu0 0
      %423 = vmatpush1.bf16.msra.mxu0 %v384
      %424 = vmatprep.subr.bf16.mxu0 0
      %425 = vmatpush1.bf16.msra.mxu0 %v385
      %426 = vmatprep.subr.bf16.mxu0 0
      %427 = vmatpush1.bf16.msra.mxu0 %v386
      %428 = vmatprep.subr.bf16.mxu0 0
      %429 = vmatpush1.bf16.msra.mxu0 %v387
      %430 = vmatprep.subr.bf16.mxu0 0
      %431 = vmatpush1.bf16.msra.mxu0 0
      %432 = vmatprep.subr.bf16.mxu0 0
      %433 = vmatpush1.bf16.msra.mxu0 0
      %434 = vmatprep.subr.bf16.mxu0 0
      %435 = vmatpush1.bf16.msra.mxu0 0
      %436 = vmatprep.subr.bf16.mxu0 0
      %437 = vmatpush1.bf16.msra.mxu0 0
      %438 = vmatprep.mubr.bf16.mxu0 %v401
      %439 = vmatmul.mubr.bf16.gmra.mrb[0].mxu0 %v300
      %v440 = vpop.f32.mrb[0].mxu0
      %v441 = vadd.f32 0.0, %v440
      %v442 = vpop.f32.mrb[0].mxu0
      %v443 = vpop.f32.mrb[0].mxu0
      %v444 = vadd.f32 0.0, %v443
      %v445 = vpop.f32.mrb[0].mxu0
      %446 = vmatprep.mubr.bf16.mxu0 %v404
      %447 = vmatmul.mubr.bf16.gmra.mrb[0].mxu0 %v302
      %v448 = vpop.f32.mrb[0].mxu0
      %v449 = vadd.f32 0.0, %v448
      %v450 = vpop.f32.mrb[0].mxu0
      %v451 = vpop.f32.mrb[0].mxu0
      %v452 = vadd.f32 0.0, %v451
      %v453 = vpop.f32.mrb[0].mxu0
      %454 = vdwg.mxu0
      %v455 = vadd.f32 %v441, %v444
      %v456 = vadd.f32 %v455, %v449
      %v457 = vadd.f32 %v456, %v452
      %v458 = vrot.slane %v457, 4
      %v459 = vadd.f32 %v457, %v458
      %v460 = vrot.slane %v459, 2
      %v461 = vadd.f32 %v459, %v460
      %v462 = vrot.slane %v461, 1
      %v463 = vadd.f32 %v461, %v462
      %v464 = vmul.f32 %v441, %v441
      %v465 = vmul.f32 %v444, %v444
      %v466 = vmul.f32 %v449, %v449
      %v467 = vmul.f32 %v452, %v452
      %v468 = vadd.f32 %v464, %v465
      %v469 = vadd.f32 %v468, %v466
      %v470 = vadd.f32 %v469, %v467
      %v471 = vrot.slane %v470, 4
      %v472 = vadd.f32 %v470, %v471
      %v473 = vrot.slane %v472, 2
      %v474 = vadd.f32 %v472, %v473
      %v475 = vrot.slane %v474, 1
      %v476 = vadd.f32 %v474, %v475
      %v477 = vsel %vm257, %v463, %v476
      %478 = vst [vmem:[%s243] sm:$0x3] %v477
      %v479 = vpack.c.bf16 %v444, %v441
      %v480 = vpack.c.bf16 %v452, %v449
      %v483 = vunpack.c.l.b16 %v479
      %v484 = vunpack.c.h.b16 %v479
      %v485 = vunpack.c.l.b16 %v480
      %v486 = vunpack.c.h.b16 %v480
      %v487 = vpack.c.b16 %v483, %v483
      %v488 = vpack.c.b16 %v484, %v484
      %v489 = vpack.c.b16 %v485, %v485
      %v490 = vpack.c.b16 %v486, %v486
      %495 = vst [vmem:[%s238] sm:$0xf] %v487
      %496 = vst [vmem:[%s238 + $0x4] sm:$0xf] %v488
      %497 = vst [vmem:[%s238 + $0x8] sm:$0xf] %v489
      %498 = vst [vmem:[%s238 + $0xc] sm:$0xf] %v490
      %s499 = smul.u32 2, %s17
      %p500 = scmp.lt.s32.totalorder %s499, 3
      %s501 = scalar_select %p500, %s499, 3
      %s502 = smul.addr %s501, 2
      %s503 = smul.addr %s502, 4
      %s504 = scalar_lea.vmem %s4, %s503
      %p505 = scmp.lt.s32.totalorder %s17, 1
      %s506 = scalar_select %p505, %s17, 1
      %s507 = smul.addr %s506, 2
      %s508 = scalar_lea.vmem %s5, %s507
      // Predicated region
      $region37: #{conv_block_forward.2} parent=35 // pred_check
        %p509 = pneg %p124
      $region38: #{conv_block_forward.2} parent=35 // pred_check_branch
        %511 = sbr.rel (%p509) target = $region40
      $region39: #{conv_block_forward.2} parent=35 // pred_region
        %s512 = smul.u32 2, %s17
      $region40: #{conv_block_forward.2} parent=35 // pred_fallthru
        _
      // Predicated region
      $region41: #{conv_block_forward.2} parent=35 // pred_check
        %p513 = pneg %p150
      $region42: #{conv_block_forward.2} parent=35 // pred_check_branch
        %515 = sbr.rel (%p513) target = $region44
      $region43: #{conv_block_forward.2} parent=35 // pred_region
        _
      $region44: #{conv_block_forward.2} parent=35 // pred_fallthru
        _
    $region36: #{conv_block_forward.2} parent=5 // pred_fallthru
      _
    %p516 = scmp.le.s32.totalorder 2, %s12
    // Predicated region
    $region45: #{conv_block_forward.2} parent=5 // pred_check
      %p517 = pneg %p516
    $region46: #{conv_block_forward.2} parent=5 // pred_check_branch
      %519 = sbr.rel (%p517) target = $region48
    $region47: #{conv_block_forward.2} parent=5 // pred_region
      %s520 = ssub.s32 %s12, 2
      // Predicated region
      $region49: #{conv_block_forward.2} parent=47 // pred_check
        %p521 = pneg %p130
      $region50: #{conv_block_forward.2} parent=47 // pred_check_branch
        %523 = sbr.rel (%p521) target = $region52
      $region51: #{conv_block_forward.2} parent=47 // pred_region
        %s524 = smul.u32 2, %s18
        %p525 = scmp.lt.s32.totalorder %s524, 3
        %s526 = scalar_select %p525, %s524, 3
        %s527 = smul.addr %s526, 2
        %s528 = smul.addr %s527, 4
        %s529 = scalar_lea.vmem %s4, %s528
      $region52: #{conv_block_forward.2} parent=47 // pred_fallthru
        _
      // Predicated region
      $region53: #{conv_block_forward.2} parent=47 // pred_check
        %p530 = pneg %p156
      $region54: #{conv_block_forward.2} parent=47 // pred_check_branch
        %532 = sbr.rel (%p530) target = $region56
      $region55: #{conv_block_forward.2} parent=47 // pred_region
        %p533 = scmp.lt.s32.totalorder %s18, 1
        %s534 = scalar_select %p533, %s18, 1
        %s535 = smul.addr %s534, 2
        %s536 = scalar_lea.vmem %s5, %s535
      $region56: #{conv_block_forward.2} parent=47 // pred_fallthru
        _
    $region48: #{conv_block_forward.2} parent=5 // pred_fallthru
      _
  $region6: #{conv_block_forward.2} parent=0 // loop_footer
    %s16 = sadd.s32 1, %s12
  $region7: #{conv_block_forward.2} parent=0 // loop_footer_branch
    %11 = sbr.rel target = $region3
  $region8: #{conv_block_forward.2} parent=0 // loop_exit
    _

// kernel: conv_block_forward.3
$region0: #{conv_block_forward.3}
  #allocation0 [shape = 'u32[]', space=smem, size = 0x4, offset = 0x4, fixed_abs, tag = 'smem constant byte address 0x4 - core index']
  #allocation1 [shape = 'u32[144,128]{1,0:T(1,128)}', space=vmem, size = 0x12000, scoped, tag = 'internal scratch']
  %s0 = inlined_call_operand.vmem [shape: bf16[4,16,128], index: 0, kind: input, shape index: {}]
  %s1 = inlined_call_operand.vmem [shape: bf16[384,128], index: 1, kind: input, shape index: {}]
  %s2 = inlined_call_operand.vmem [shape: f32[1,128], index: 2, kind: input, shape index: {}]
  %s3 = inlined_call_operand.vmem [shape: f32[1,128], index: 3, kind: input, shape index: {}]
  %s4 = inlined_call_operand.vmem [shape: f32[4,16,128], index: 4, kind: output, shape index: {0}]
  %s5 = inlined_call_operand.vmem [shape: f32[2,2,128], index: 5, kind: output, shape index: {1}]
  %6 = xla_tuple %s4, %s5
  %s7 = sld [smem:[#allocation0]]
  $region57: #{conv_block_forward.3} parent=0
    _
  %s9 = ssub.s32 1, %s7
  %s10 = scalar_select 0, %s9, %s7
  loop: start=0, step=1, limit=4
  $region2: #{conv_block_forward.3} parent=0 // loop_pre_header
    _
  $region3: #{conv_block_forward.3} parent=0 // loop_header
    %s12 = sphi 0, %s16
    %p13 = scmp.ge.s32.totalorder %s12, 4
    %s22 = sphi 0, %s24
    %s25 = sphi 0, %s22
    %s26 = sphi 0, %s25
    %s42 = sphi 0, %s26
    %s46 = sphi 0, %s46
    %s48 = sphi 0, %s46
    %s49 = sphi 0, %s48
    %s63 = sphi 0, %s49
    %s67 = sphi 0, %s67
    %s69 = sphi 0, %s67
    %s70 = sphi 0, %s69
    %s84 = sphi 0, %s70
    %s88 = sphi 0, %s88
    %s90 = sphi 0, %s88
    %s91 = sphi 0, %s90
    %s105 = sphi 0, %s91
    %s111 = sphi 0, %s113
    %s114 = sphi 0, %s111
    %s115 = sphi 0, %s114
    %s131 = sphi 0, %s115
    %s137 = sphi 0, %s139
    %s140 = sphi 0, %s137
    %s141 = sphi 0, %s140
    %s157 = sphi 0, %s141
  $region4: #{conv_block_forward.3} parent=0 // loop_header_branch
    %15 = sbr.rel (%p13) target = $region8
  $region5: #{conv_block_forward.3} parent=0 // loop_body
    %s17 = ssub.s32 %s12, 1
    %s18 = ssub.s32 %s12, 2
    %s19 = sadd.s32 %s12, 1
    %s20 = ssub.s32 %s12, %s19
    %p21 = scmp.eq.s32.totalorder %s20, 0
    %s23 = sadd.s32 %s22, 1
    %s24 = scalar_select %p21, %s22, %s23
    %p27 = pneg %p21
    %p28 = scmp.eq.s32.totalorder %s12, 1
    %p29 = por %p27, %p28
    %p30 = scmp.ne.s32.totalorder %s22, %s25
    %p31 = scmp.eq.s32.totalorder %s12, 0
    %p32 = por %p30, %p31
    %p33 = scmp.ne.s32.totalorder %s22, %s25
    %p34 = scmp.eq.s32.totalorder %s17, 1
    %p35 = por %p33, %p34
    %p36 = scmp.ne.s32.totalorder %s25, %s26
    %p37 = scmp.eq.s32.totalorder %s17, 0
    %p38 = por %p36, %p37
    %p39 = scmp.ne.s32.totalorder %s25, %s26
    %p40 = scmp.eq.s32.totalorder %s18, 1
    %p41 = por %p39, %p40
    %p43 = scmp.ne.s32.totalorder %s26, %s42
    %p44 = scmp.eq.s32.totalorder %s18, 0
    %p45 = por %p43, %p44
    %s47 = sadd.s32 %s46, 1
    %p50 = scmp.eq.s32.totalorder %s12, 1
    %p51 = scmp.ne.s32.totalorder %s46, %s48
    %p52 = scmp.eq.s32.totalorder %s12, 0
    %p53 = por %p51, %p52
    %p54 = scmp.ne.s32.totalorder %s46, %s48
    %p55 = scmp.eq.s32.totalorder %s17, 1
    %p56 = por %p54, %p55
    %p57 = scmp.ne.s32.totalorder %s48, %s49
    %p58 = scmp.eq.s32.totalorder %s17, 0
    %p59 = por %p57, %p58
    %p60 = scmp.ne.s32.totalorder %s48, %s49
    %p61 = scmp.eq.s32.totalorder %s18, 1
    %p62 = por %p60, %p61
    %p64 = scmp.ne.s32.totalorder %s49, %s63
    %p65 = scmp.eq.s32.totalorder %s18, 0
    %p66 = por %p64, %p65
    %s68 = sadd.s32 %s67, 1
    %p71 = scmp.eq.s32.totalorder %s12, 1
    %p72 = scmp.ne.s32.totalorder %s67, %s69
    %p73 = scmp.eq.s32.totalorder %s12, 0
    %p74 = por %p72, %p73
    %p75 = scmp.ne.s32.totalorder %s67, %s69
    %p76 = scmp.eq.s32.totalorder %s17, 1
    %p77 = por %p75, %p76
    %p78 = scmp.ne.s32.totalorder %s69, %s70
    %p79 = scmp.eq.s32.totalorder %s17, 0
    %p80 = por %p78, %p79
    %p81 = scmp.ne.s32.totalorder %s69, %s70
    %p82 = scmp.eq.s32.totalorder %s18, 1
    %p83 = por %p81, %p82
    %p85 = scmp.ne.s32.totalorder %s70, %s84
    %p86 = scmp.eq.s32.totalorder %s18, 0
    %p87 = por %p85, %p86
    %s89 = sadd.s32 %s88, 1
    %p92 = scmp.eq.s32.totalorder %s12, 1
    %p93 = scmp.ne.s32.totalorder %s88, %s90
    %p94 = scmp.eq.s32.totalorder %s12, 0
    %p95 = por %p93, %p94
    %p96 = scmp.ne.s32.totalorder %s88, %s90
    %p97 = scmp.eq.s32.totalorder %s17, 1
    %p98 = por %p96, %p97
    %p99 = scmp.ne.s32.totalorder %s90, %s91
    %p100 = scmp.eq.s32.totalorder %s17, 0
    %p101 = por %p99, %p100
    %p102 = scmp.ne.s32.totalorder %s90, %s91
    %p103 = scmp.eq.s32.totalorder %s18, 1
    %p104 = por %p102, %p103
    %p106 = scmp.ne.s32.totalorder %s91, %s105
    %p107 = scmp.eq.s32.totalorder %s18, 0
    %p108 = por %p106, %p107
    %s109 = ssub.s32 %s12, %s19
    %p110 = scmp.eq.s32.totalorder %s109, 0
    %s112 = sadd.s32 %s111, 1
    %s113 = scalar_select %p110, %s111, %s112
    %p116 = pneg %p110
    %p117 = scmp.eq.s32.totalorder %s12, 1
    %p118 = por %p116, %p117
    %p119 = scmp.ne.s32.totalorder %s111, %s114
    %p120 = scmp.eq.s32.totalorder %s12, 0
    %p121 = por %p119, %p120
    %p122 = scmp.ne.s32.totalorder %s111, %s114
    %p123 = scmp.eq.s32.totalorder %s17, 1
    %p124 = por %p122, %p123
    %p125 = scmp.ne.s32.totalorder %s114, %s115
    %p126 = scmp.eq.s32.totalorder %s17, 0
    %p127 = por %p125, %p126
    %p128 = scmp.ne.s32.totalorder %s114, %s115
    %p129 = scmp.eq.s32.totalorder %s18, 1
    %p130 = por %p128, %p129
    %p132 = scmp.ne.s32.totalorder %s115, %s131
    %p133 = scmp.eq.s32.totalorder %s18, 0
    %p134 = por %p132, %p133
    %s135 = ssub.s32 %s12, %s19
    %p136 = scmp.eq.s32.totalorder %s135, 0
    %s138 = sadd.s32 %s137, 1
    %s139 = scalar_select %p136, %s137, %s138
    %p142 = pneg %p136
    %p143 = scmp.eq.s32.totalorder %s12, 1
    %p144 = por %p142, %p143
    %p145 = scmp.ne.s32.totalorder %s137, %s140
    %p146 = scmp.eq.s32.totalorder %s12, 0
    %p147 = por %p145, %p146
    %p148 = scmp.ne.s32.totalorder %s137, %s140
    %p149 = scmp.eq.s32.totalorder %s17, 1
    %p150 = por %p148, %p149
    %p151 = scmp.ne.s32.totalorder %s140, %s141
    %p152 = scmp.eq.s32.totalorder %s17, 0
    %p153 = por %p151, %p152
    %p154 = scmp.ne.s32.totalorder %s140, %s141
    %p155 = scmp.eq.s32.totalorder %s18, 1
    %p156 = por %p154, %p155
    %p158 = scmp.ne.s32.totalorder %s141, %s157
    %p159 = scmp.eq.s32.totalorder %s18, 0
    %p160 = por %p158, %p159
    %p161 = scmp.le.s32.totalorder 1, %s12
    %p162 = scmp.lt.s32.totalorder %s12, 3
    %p163 = pnand %p161, %p162
    %p164 = pneg %p163
    // Predicated region
    $region9: #{conv_block_forward.3} parent=5 // pred_check
      _
    $region10: #{conv_block_forward.3} parent=5 // pred_check_branch
      %166 = sbr.rel (%p163) target = $region12
    $region11: #{conv_block_forward.3} parent=5 // pred_region
      %s167 = ssub.s32 %s12, 1
      // Predicated region
      $region13: #{conv_block_forward.3} parent=11 // pred_check
        %p168 = pneg %p59
      $region14: #{conv_block_forward.3} parent=11 // pred_check_branch
        %170 = sbr.rel (%p168) target = $region16
      $region15: #{conv_block_forward.3} parent=11 // pred_region
        _
      $region16: #{conv_block_forward.3} parent=11 // pred_fallthru
        _
      // Predicated region
      $region17: #{conv_block_forward.3} parent=11 // pred_check
        %p171 = pneg %p80
      $region18: #{conv_block_forward.3} parent=11 // pred_check_branch
        %173 = sbr.rel (%p171) target = $region20
      $region19: #{conv_block_forward.3} parent=11 // pred_region
        _
      $region20: #{conv_block_forward.3} parent=11 // pred_fallthru
        _
      // Predicated region
      $region21: #{conv_block_forward.3} parent=11 // pred_check
        %p174 = pneg %p101
      $region22: #{conv_block_forward.3} parent=11 // pred_check_branch
        %176 = sbr.rel (%p174) target = $region24
      $region23: #{conv_block_forward.3} parent=11 // pred_region
        _
      $region24: #{conv_block_forward.3} parent=11 // pred_fallthru
        _
    $region12: #{conv_block_forward.3} parent=5 // pred_fallthru
      _
    %p177 = scmp.lt.s32.totalorder %s12, 2
    // Predicated region
    $region25: #{conv_block_forward.3} parent=5 // pred_check
      %p178 = pneg %p177
    $region26: #{conv_block_forward.3} parent=5 // pred_check_branch
      %180 = sbr.rel (%p178) target = $region28
    $region27: #{conv_block_forward.3} parent=5 // pred_region
      // Predicated region
      $region29: #{conv_block_forward.3} parent=27 // pred_check
        %p181 = pneg %p32
      $region30: #{conv_block_forward.3} parent=27 // pred_check_branch
        %183 = sbr.rel (%p181) target = $region32
      $region31: #{conv_block_forward.3} parent=27 // pred_region
        %s184 = smul.u32 2, %s12
        %p185 = scmp.lt.s32.totalorder %s184, 3
        %s186 = scalar_select %p185, %s184, 3
        %s187 = smul.addr %s186, 2
        %s188 = smul.addr %s187, 4
        %s189 = scalar_lea.vmem %s0, %s188
        %s190 = smul.u32 2, %s12
      $region32: #{conv_block_forward.3} parent=27 // pred_fallthru
        _
    $region28: #{conv_block_forward.3} parent=5 // pred_fallthru
      _
    %p191 = scmp.le.s32.totalorder 1, %s12
    %p192 = scmp.lt.s32.totalorder %s12, 3
    %p193 = pnand %p191, %p192
    %p194 = pneg %p193
    // Predicated region
    $region33: #{conv_block_forward.3} parent=5 // pred_check
      _
    $region34: #{conv_block_forward.3} parent=5 // pred_check_branch
      %196 = sbr.rel (%p193) target = $region36
    $region35: #{conv_block_forward.3} parent=5 // pred_region
      %s197 = ssub.s32 %s12, 1
      %s198 = smul.u32 2, %s17
      %p199 = scmp.lt.s32.totalorder %s198, 3
      %s200 = scalar_select %p199, %s198, 3
      %s201 = smul.addr %s200, 2
      %s202 = smul.addr %s201, 4
      %s203 = scalar_lea.vmem %s0, %s202
      %p204 = pneg %p38
      %p205 = pneg %p35
      %p206 = pneg %p59
      %p207 = pneg %p56
      %p208 = pneg %p80
      %p209 = pneg %p77
      %p210 = pneg %p101
      %p211 = pneg %p98
      %p212 = pneg %p127
      %p213 = pneg %p124
      %s214 = smul.u32 2, %s17
      %p215 = scmp.lt.s32.totalorder %s214, 3
      %s216 = scalar_select %p215, %s214, 3
      %s217 = smul.addr %s216, 2
      %s218 = smul.addr %s217, 8
      %s219 = scalar_lea.vmem %s4, %s218
      %p220 = pneg %p153
      %p221 = pneg %p150
      %p222 = scmp.lt.s32.totalorder %s17, 1
      %s223 = scalar_select %p222, %s17, 1
      %s224 = smul.addr %s223, 2
      %s225 = scalar_lea.vmem %s5, %s224
      %s226 = smul.u32 2, %s17
      %p227 = scmp.lt.s32.totalorder %s226, 3
      %s228 = scalar_select %p227, %s226, 3
      %s229 = smul.addr %s228, 2
      %s230 = smul.addr %s229, 4
      %s231 = scalar_lea.vmem %s0, %s230
      %s232 = smul.u32 2, %s17
      %s233 = smul.u32 2, %s17
      %p234 = scmp.lt.s32.totalorder %s233, 3
      %s235 = scalar_select %p234, %s233, 3
      %s236 = smul.addr %s235, 2
      %s237 = smul.addr %s236, 8
      %s238 = scalar_lea.vmem %s4, %s237
      %s239 = smul.u32 2, %s17
      %p240 = scmp.lt.s32.totalorder %s17, 1
      %s241 = scalar_select %p240, %s17, 1
      %s242 = smul.addr %s241, 2
      %s243 = scalar_lea.vmem %s5, %s242
      %v245 = vld [vmem:[%s231] sm:$0xf]
      %v246 = vld [vmem:[%s231 + $0x4] sm:$0xf]
      %v247 = vld [vmem:[%s231 + $0x8] sm:$0xf]
      %v248 = vld [vmem:[%s231 + $0xc] sm:$0xf]
      %v249 = vunpack.c.l.bf16 %v245
      %v250 = vunpack.c.l.bf16 %v246
      %v251 = vunpack.c.l.bf16 %v247
      %v252 = vunpack.c.l.bf16 %v248
      %v253 = vld [vmem:[%s2] sm:$0x1]
      %v255 = vlaneseq
      %v256 = vshrl.u32 %v255, 7
      %v257 = vsub.s32 0, %v256
      %v258 = vrot.slane %v253, %v257
      %v260 = vmul.f32 %v249, %v258
      %v261 = vmul.f32 %v250, %v258
      %v262 = vmul.f32 %v251, %v258
      %v263 = vmul.f32 %v252, %v258
      %v264 = vld [vmem:[%s3] sm:$0x1]
      %v266 = vlaneseq
      %v267 = vshrl.u32 %v266, 7
      %v268 = vsub.s32 0, %v267
      %v269 = vrot.slane %v264, %v268
      %v271 = vadd.f32 %v260, %v269
      %v272 = vadd.f32 %v261, %v269
      %v273 = vadd.f32 %v262, %v269
      %v274 = vadd.f32 %v263, %v269
      %v275 = vmax.f32 %v271, 0.0
      %v276 = vmax.f32 %v272, 0.0
      %v277 = vmax.f32 %v273, 0.0
      %v278 = vmax.f32 %v274, 0.0
      %v281 = vrot.slane %v275, 1
      %v282 = vrot.slane %v277, 1
      %vm287 = vcmask 1040384
      %v288 = vrot.slane %v275, 7
      %v289 = vrot.slane %v276, 7
      %v290 = vsel %vm287, %v288, %v289
      %v291 = vrot.slane %v277, 7
      %v292 = vrot.slane %v278, 7
      %v293 = vsel %vm287, %v291, %v292
      %v298 = vsel %vm287, %v281, %v288
      %v299 = vsel %vm287, %v282, %v291
      %vm300 = vcmask 1046528
      %v301 = vrot.slane %v276, 1
      %v302 = vsel %vm300, %v281, %v301
      %v303 = vrot.slane %v278, 1
      %v304 = vsel %vm300, %v282, %v303
      %v311 = vsel %vm300, %v301, %v289
      %v312 = vsel %vm300, %v303, %v292
      %v313 = vpack.c.bf16 %v290, %v298
      %v314 = vpack.c.bf16 %v276, %v275
      %v315 = vpack.c.bf16 %v311, %v302
      %v316 = vpack.c.bf16 %v293, %v299
      %v317 = vpack.c.bf16 %v278, %v277
      %v318 = vpack.c.bf16 %v312, %v304
      %v319 = vld [vmem:[%s1] sm:$0xf]
      %v320 = vld [vmem:[%s1 + $0x4] sm:$0xf]
      %v321 = vld [vmem:[%s1 + $0x8] sm:$0xf]
      %v322 = vld [vmem:[%s1 + $0xc] sm:$0xf]
      %v323 = vld [vmem:[%s1 + $0x10] sm:$0xf]
      %v324 = vld [vmem:[%s1 + $0x14] sm:$0xf]
      %v325 = vld [vmem:[%s1 + $0x18] sm:$0xf]
      %v326 = vld [vmem:[%s1 + $0x1c] sm:$0xf]
      %v327 = vld [vmem:[%s1 + $0x20] sm:$0xf]
      %v328 = vld [vmem:[%s1 + $0x24] sm:$0xf]
      %v329 = vld [vmem:[%s1 + $0x28] sm:$0xf]
      %v330 = vld [vmem:[%s1 + $0x2c] sm:$0xf]
      %v331 = vld [vmem:[%s1 + $0x30] sm:$0xf]
      %v332 = vld [vmem:[%s1 + $0x34] sm:$0xf]
      %v333 = vld [vmem:[%s1 + $0x38] sm:$0xf]
      %v334 = vld [vmem:[%s1 + $0x3c] sm:$0xf]
      %v335 = vld [vmem:[%s1 + $0x40] sm:$0xf]
      %v336 = vld [vmem:[%s1 + $0x44] sm:$0xf]
      %v337 = vld [vmem:[%s1 + $0x48] sm:$0xf]
      %v338 = vld [vmem:[%s1 + $0x4c] sm:$0xf]
      %v339 = vld [vmem:[%s1 + $0x50] sm:$0xf]
      %v340 = vld [vmem:[%s1 + $0x54] sm:$0xf]
      %v341 = vld [vmem:[%s1 + $0x58] sm:$0xf]
      %v342 = vld [vmem:[%s1 + $0x5c] sm:$0xf]
      %v343 = vld [vmem:[%s1 + $0x60] sm:$0xf]
      %v344 = vld [vmem:[%s1 + $0x64] sm:$0xf]
      %v345 = vld [vmem:[%s1 + $0x68] sm:$0xf]
      %v346 = vld [vmem:[%s1 + $0x6c] sm:$0xf]
      %v347 = vld [vmem:[%s1 + $0x70] sm:$0xf]
      %v348 = vld [vmem:[%s1 + $0x74] sm:$0xf]
      %v349 = vld [vmem:[%s1 + $0x78] sm:$0xf]
      %v350 = vld [vmem:[%s1 + $0x7c] sm:$0xf]
      %v351 = vld [vmem:[%s1 + $0x80] sm:$0xf]
      %v352 = vld [vmem:[%s1 + $0x84] sm:$0xf]
      %v353 = vld [vmem:[%s1 + $0x88] sm:$0xf]
      %v354 = vld [vmem:[%s1 + $0x8c] sm:$0xf]
      %v355 = vld [vmem:[%s1 + $0x90] sm:$0xf]
      %v356 = vld [vmem:[%s1 + $0x94] sm:$0xf]
      %v357 = vld [vmem:[%s1 + $0x98] sm:$0xf]
      %v358 = vld [vmem:[%s1 + $0x9c] sm:$0xf]
      %v359 = vld [vmem:[%s1 + $0xa0] sm:$0xf]
      %v360 = vld [vmem:[%s1 + $0xa4] sm:$0xf]
      %v361 = vld [vmem:[%s1 + $0xa8] sm:$0xf]
      %v362 = vld [vmem:[%s1 + $0xac] sm:$0xf]
      %v363 = vld [vmem:[%s1 + $0xb0] sm:$0xf]
      %v364 = vld [vmem:[%s1 + $0xb4] sm:$0xf]
      %v365 = vld [vmem:[%s1 + $0xb8] sm:$0xf]
      %v366 = vld [vmem:[%s1 + $0xbc] sm:$0xf]
      %v415 = vunpack.c.l.b16 %v319
      %v416 = vunpack.c.l.b16 %v320
      %v417 = vunpack.c.l.b16 %v321
      %v418 = vunpack.c.l.b16 %v322
      %v419 = vunpack.c.l.b16 %v323
      %v420 = vunpack.c.l.b16 %v324
      %v421 = vunpack.c.l.b16 %v325
      %v422 = vunpack.c.l.b16 %v326
      %v423 = vunpack.c.l.b16 %v327
      %v424 = vunpack.c.l.b16 %v328
      %v425 = vunpack.c.l.b16 %v329
      %v426 = vunpack.c.l.b16 %v330
      %v427 = vunpack.c.l.b16 %v331
      %v428 = vunpack.c.l.b16 %v332
      %v429 = vunpack.c.l.b16 %v333
      %v430 = vunpack.c.l.b16 %v334
      %v431 = vunpack.c.l.b16 %v335
      %v432 = vunpack.c.l.b16 %v336
      %v433 = vunpack.c.l.b16 %v337
      %v434 = vunpack.c.l.b16 %v338
      %v435 = vunpack.c.l.b16 %v339
      %v436 = vunpack.c.l.b16 %v340
      %v437 = vunpack.c.l.b16 %v341
      %v438 = vunpack.c.l.b16 %v342
      %v439 = vunpack.c.l.b16 %v343
      %v440 = vunpack.c.l.b16 %v344
      %v441 = vunpack.c.l.b16 %v345
      %v442 = vunpack.c.l.b16 %v346
      %v443 = vunpack.c.l.b16 %v347
      %v444 = vunpack.c.l.b16 %v348
      %v445 = vunpack.c.l.b16 %v349
      %v446 = vunpack.c.l.b16 %v350
      %v447 = vunpack.c.l.b16 %v351
      %v448 = vunpack.c.l.b16 %v352
      %v449 = vunpack.c.l.b16 %v353
      %v450 = vunpack.c.l.b16 %v354
      %v451 = vunpack.c.l.b16 %v355
      %v452 = vunpack.c.l.b16 %v356
      %v453 = vunpack.c.l.b16 %v357
      %v454 = vunpack.c.l.b16 %v358
      %v455 = vunpack.c.l.b16 %v359
      %v456 = vunpack.c.l.b16 %v360
      %v457 = vunpack.c.l.b16 %v361
      %v458 = vunpack.c.l.b16 %v362
      %v459 = vunpack.c.l.b16 %v363
      %v460 = vunpack.c.l.b16 %v364
      %v461 = vunpack.c.l.b16 %v365
      %v462 = vunpack.c.l.b16 %v366
      %v463 = vpack.c.b16 %v416, %v415
      %v464 = vpack.c.b16 %v418, %v417
      %v465 = vpack.c.b16 %v420, %v419
      %v466 = vpack.c.b16 %v422, %v421
      %v467 = vpack.c.b16 %v424, %v423
      %v468 = vpack.c.b16 %v426, %v425
      %v469 = vpack.c.b16 %v428, %v427
      %v470 = vpack.c.b16 %v430, %v429
      %v471 = vpack.c.b16 %v432, %v431
      %v472 = vpack.c.b16 %v434, %v433
      %v473 = vpack.c.b16 %v436, %v435
      %v474 = vpack.c.b16 %v438, %v437
      %v475 = vpack.c.b16 %v440, %v439
      %v476 = vpack.c.b16 %v442, %v441
      %v477 = vpack.c.b16 %v444, %v443
      %v478 = vpack.c.b16 %v446, %v445
      %v479 = vpack.c.b16 %v448, %v447
      %v480 = vpack.c.b16 %v450, %v449
      %v481 = vpack.c.b16 %v452, %v451
      %v482 = vpack.c.b16 %v454, %v453
      %v483 = vpack.c.b16 %v456, %v455
      %v484 = vpack.c.b16 %v458, %v457
      %v485 = vpack.c.b16 %v460, %v459
      %v486 = vpack.c.b16 %v462, %v461
      %511 = vmatprep.subr.bf16.mxu0 0
      %512 = vmatpush1.bf16.msra.mxu0 %v463
      %513 = vmatprep.subr.bf16.mxu0 0
      %514 = vmatpush1.bf16.msra.mxu0 %v464
      %515 = vmatprep.subr.bf16.mxu0 0
      %516 = vmatpush1.bf16.msra.mxu0 %v465
      %517 = vmatprep.subr.bf16.mxu0 0
      %518 = vmatpush1.bf16.msra.mxu0 %v466
      %519 = vmatprep.subr.bf16.mxu0 0
      %520 = vmatpush1.bf16.msra.mxu0 %v467
      %521 = vmatprep.subr.bf16.mxu0 0
      %522 = vmatpush1.bf16.msra.mxu0 %v468
      %523 = vmatprep.subr.bf16.mxu0 0
      %524 = vmatpush1.bf16.msra.mxu0 %v469
      %525 = vmatprep.subr.bf16.mxu0 0
      %526 = vmatpush1.bf16.msra.mxu0 %v470
      %527 = vmatprep.subr.bf16.mxu0 0
      %528 = vmatpush1.bf16.msra.mxu0 %v471
      %529 = vmatprep.subr.bf16.mxu0 0
      %530 = vmatpush1.bf16.msra.mxu0 %v472
      %531 = vmatprep.subr.bf16.mxu0 0
      %532 = vmatpush1.bf16.msra.mxu0 %v473
      %533 = vmatprep.subr.bf16.mxu0 0
      %534 = vmatpush1.bf16.msra.mxu0 %v474
      %535 = vmatprep.subr.bf16.mxu0 0
      %536 = vmatpush1.bf16.msra.mxu0 %v475
      %537 = vmatprep.subr.bf16.mxu0 0
      %538 = vmatpush1.bf16.msra.mxu0 %v476
      %539 = vmatprep.subr.bf16.mxu0 0
      %540 = vmatpush1.bf16.msra.mxu0 %v477
      %541 = vmatprep.subr.bf16.mxu0 0
      %542 = vmatpush1.bf16.msra.mxu0 %v478
      %543 = vmatprep.mubr.bf16.mxu0 %v314
      %544 = vmatmul.mubr.bf16.gmra.mrb[0].mxu0 %v313
      %v545 = vpop.f32.mrb[0].mxu0
      %v546 = vadd.f32 0.0, %v545
      %v547 = vpop.f32.mrb[0].mxu0
      %v548 = vpop.f32.mrb[0].mxu0
      %v549 = vadd.f32 0.0, %v548
      %v550 = vpop.f32.mrb[0].mxu0
      %551 = vmatprep.mubr.bf16.mxu0 %v317
      %552 = vmatmul.mubr.bf16.gmra.mrb[0].mxu0 %v316
      %v553 = vpop.f32.mrb[0].mxu0
      %v554 = vadd.f32 0.0, %v553
      %v555 = vpop.f32.mrb[0].mxu0
      %v556 = vpop.f32.mrb[0].mxu0
      %v557 = vadd.f32 0.0, %v556
      %v558 = vpop.f32.mrb[0].mxu0
      %559 = vdwg.mxu0
      %560 = vmatprep.subr.bf16.mxu0 0
      %561 = vmatpush1.bf16.msra.mxu0 %v479
      %562 = vmatprep.subr.bf16.mxu0 0
      %563 = vmatpush1.bf16.msra.mxu0 %v480
      %564 = vmatprep.subr.bf16.mxu0 0
      %565 = vmatpush1.bf16.msra.mxu0 %v481
      %566 = vmatprep.subr.bf16.mxu0 0
      %567 = vmatpush1.bf16.msra.mxu0 %v482
      %568 = vmatprep.subr.bf16.mxu0 0
      %569 = vmatpush1.bf16.msra.mxu0 %v483
      %570 = vmatprep.subr.bf16.mxu0 0
      %571 = vmatpush1.bf16.msra.mxu0 %v484
      %572 = vmatprep.subr.bf16.mxu0 0
      %573 = vmatpush1.bf16.msra.mxu0 %v485
      %574 = vmatprep.subr.bf16.mxu0 0
      %575 = vmatpush1.bf16.msra.mxu0 %v486
      %576 = vmatprep.subr.bf16.mxu0 0
      %577 = vmatpush1.bf16.msra.mxu0 0
      %578 = vmatprep.subr.bf16.mxu0 0
      %579 = vmatpush1.bf16.msra.mxu0 0
      %580 = vmatprep.subr.bf16.mxu0 0
      %581 = vmatpush1.bf16.msra.mxu0 0
      %582 = vmatprep.subr.bf16.mxu0 0
      %583 = vmatpush1.bf16.msra.mxu0 0
      %584 = vmatprep.subr.bf16.mxu0 0
      %585 = vmatpush1.bf16.msra.mxu0 0
      %586 = vmatprep.subr.bf16.mxu0 0
      %587 = vmatpush1.bf16.msra.mxu0 0
      %588 = vmatprep.subr.bf16.mxu0 0
      %589 = vmatpush1.bf16.msra.mxu0 0
      %590 = vmatprep.subr.bf16.mxu0 0
      %591 = vmatpush1.bf16.msra.mxu0 0
      %592 = vmatprep.mubr.bf16.mxu0 0
      %593 = vmatmul.mubr.bf16.gmra.mrb[0].mxu0 %v315
      %v594 = vpop.f32.mrb[0].mxu0
      %v595 = vadd.f32 %v546, %v594
      %v596 = vpop.f32.mrb[0].mxu0
      %v597 = vpop.f32.mrb[0].mxu0
      %v598 = vadd.f32 %v549, %v597
      %v599 = vpop.f32.mrb[0].mxu0
      %600 = vmatprep.mubr.bf16.mxu0 0
      %601 = vmatmul.mubr.bf16.gmra.mrb[0].mxu0 %v318
      %v602 = vpop.f32.mrb[0].mxu0
      %v603 = vadd.f32 %v554, %v602
      %v604 = vpop.f32.mrb[0].mxu0
      %v605 = vpop.f32.mrb[0].mxu0
      %v606 = vadd.f32 %v557, %v605
      %v607 = vpop.f32.mrb[0].mxu0
      %608 = vdwg.mxu0
      %v609 = vadd.f32 %v595, %v598
      %v610 = vadd.f32 %v609, %v603
      %v611 = vadd.f32 %v610, %v606
      %v612 = vrot.slane %v611, 4
      %v613 = vadd.f32 %v611, %v612
      %v614 = vrot.slane %v613, 2
      %v615 = vadd.f32 %v613, %v614
      %v616 = vrot.slane %v615, 1
      %v617 = vadd.f32 %v615, %v616
      %v618 = vmul.f32 %v595, %v595
      %v619 = vmul.f32 %v598, %v598
      %v620 = vmul.f32 %v603, %v603
      %v621 = vmul.f32 %v606, %v606
      %v622 = vadd.f32 %v618, %v619
      %v623 = vadd.f32 %v622, %v620
      %v624 = vadd.f32 %v623, %v621
      %v625 = vrot.slane %v624, 4
      %v626 = vadd.f32 %v624, %v625
      %v627 = vrot.slane %v626, 2
      %v628 = vadd.f32 %v626, %v627
      %v629 = vrot.slane %v628, 1
      %v630 = vadd.f32 %v628, %v629
      %v631 = vsel %vm287, %v617, %v630
      %632 = vst [vmem:[%s243] sm:$0x3] %v631
      %633 = vst [vmem:[%s238] sm:$0xff] %v595
      %634 = vst [vmem:[%s238 + $0x8] sm:$0xff] %v598
      %635 = vst [vmem:[%s238 + $0x10] sm:$0xff] %v603
      %636 = vst [vmem:[%s238 + $0x18] sm:$0xff] %v606
      %s637 = smul.u32 2, %s17
      %p638 = scmp.lt.s32.totalorder %s637, 3
      %s639 = scalar_select %p638, %s637, 3
      %s640 = smul.addr %s639, 2
      %s641 = smul.addr %s640, 8
      %s642 = scalar_lea.vmem %s4, %s641
      %p643 = scmp.lt.s32.totalorder %s17, 1
      %s644 = scalar_select %p643, %s17, 1
      %s645 = smul.addr %s644, 2
      %s646 = scalar_lea.vmem %s5, %s645
      // Predicated region
      $region37: #{conv_block_forward.3} parent=35 // pred_check
        %p647 = pneg %p124
      $region38: #{conv_block_forward.3} parent=35 // pred_check_branch
        %649 = sbr.rel (%p647) target = $region40
      $region39: #{conv_block_forward.3} parent=35 // pred_region
        %s650 = smul.u32 2, %s17
      $region40: #{conv_block_forward.3} parent=35 // pred_fallthru
        _
      // Predicated region
      $region41: #{conv_block_forward.3} parent=35 // pred_check
        %p651 = pneg %p150
      $region42: #{conv_block_forward.3} parent=35 // pred_check_branch
        %653 = sbr.rel (%p651) target = $region44
      $region43: #{conv_block_forward.3} parent=35 // pred_region
        _
      $region44: #{conv_block_forward.3} parent=35 // pred_fallthru
        _
    $region36: #{conv_block_forward.3} parent=5 // pred_fallthru
      _
    %p654 = scmp.le.s32.totalorder 2, %s12
    // Predicated region
    $region45: #{conv_block_forward.3} parent=5 // pred_check
      %p655 = pneg %p654
    $region46: #{conv_block_forward.3} parent=5 // pred_check_branch
      %657 = sbr.rel (%p655) target = $region48
    $region47: #{conv_block_forward.3} parent=5 // pred_region
      %s658 = ssub.s32 %s12, 2
      // Predicated region
      $region49: #{conv_block_forward.3} parent=47 // pred_check
        %p659 = pneg %p130
      $region50: #{conv_block_forward.3} parent=47 // pred_check_branch
        %661 = sbr.rel (%p659) target = $region52
      $region51: #{conv_block_forward.3} parent=47 // pred_region
        %s662 = smul.u32 2, %s18
        %p663 = scmp.lt.s32.totalorder %s662, 3
        %s664 = scalar_select %p663, %s662, 3
        %s665 = smul.addr %s664, 2
        %s666 = smul.addr %s665, 8
        %s667 = scalar_lea.vmem %s4, %s666
      $region52: #{conv_block_forward.3} parent=47 // pred_fallthru
        _
      // Predicated region
      $region53: #{conv_block_forward.3} parent=47 // pred_check
        %p668 = pneg %p156
      $region54: #{conv_block_forward.3} parent=47 // pred_check_branch
        %670 = sbr.rel (%p668) target = $region56
      $region55: #{conv_block_forward.3} parent=47 // pred_region
        %p671 = scmp.lt.s32.totalorder %s18, 1
        %s672 = scalar_select %p671, %s18, 1
        %s673 = smul.addr %s672, 2
        %s674 = scalar_lea.vmem %s5, %s673
      $region56: #{conv_block_forward.3} parent=47 // pred_fallthru
        _
    $region48: #{conv_block_forward.3} parent=5 // pred_fallthru
      _
  $region6: #{conv_block_forward.3} parent=0 // loop_footer
    %s16 = sadd.s32 1, %s12
  $region7: #{conv_block_forward.3} parent=0 // loop_footer_branch
    %11 = sbr.rel target = $region3
  $region8: #{conv_block_forward.3} parent=0 // loop_exit
    _

</llo_original>
